<compile_context>
chip_gen: v7x
topology: tpu7x:2x2x1
jax: 0.10.0
libtpu: 0.0.40
codegen_flags: <defaults>
</compile_context>

<pallas_src>
import jax
import jax.numpy as jnp
from jax.experimental import pallas as pl
from jax.experimental.pallas import tpu as pltpu

D_IN = (20 + 3) * (10 + 3 + 3)   # 368 (input feature width; stays unpadded)
D_H = 384                        # hidden width padded to 3*128 for lane-dense tiles
D_OUT = 5
D_OUT_PAD = 128                  # lane-dense output block; sliced to 5 in the wrapper
NEG_BIG = -1.0e30                # pushes padded logit columns out of the softmax
TB_MAX = 1024                    # max batch-tile rows (sized against v7x 32 MiB scoped VMEM)


def _use_bf16_epilogue():
    """bf16 bias-add/SiLU epilogue on chips with bf16 VPU/EUP (v6e/v7x); f32 on v5e."""
    try:
        kind = jax.devices()[0].device_kind.lower()
    except Exception:
        return True
    return not any(tag in kind for tag in ("v5e", "v5 lite", "v5lite"))


def _make_kernel(bf16_epilogue):
    epi = jnp.bfloat16 if bf16_epilogue else jnp.float32

    def _silu(v):
        # sigmoid(v) == 0.5 * (tanh(v/2) + 1): tanh goes to the EUP slot (free vs VALU)
        half = jnp.asarray(0.5, v.dtype)
        one = jnp.asarray(1.0, v.dtype)
        return v * (half * (jnp.tanh(v * half) + one))

    def net_kernel(x_ref,
                   w1_ref, b1_ref,
                   w2_ref, b2_ref,
                   w3_ref, b3_ref,
                   w4_ref, b4_ref,
                   o_ref):
        # Cast per-tile in vregs; matmuls run in bf16 on the MXU, accumulate in f32.
        h = x_ref[...].astype(jnp.bfloat16)                              # (TB, 368)

        for w_ref, b_ref in ((w1_ref, b1_ref), (w2_ref, b2_ref), (w3_ref, b3_ref)):
            a = jnp.dot(h, w_ref[...], preferred_element_type=jnp.float32)
            a = a.astype(epi) + b_ref[...].astype(epi)                   # (TB, 384)
            h = _silu(a).astype(jnp.bfloat16)
            # dropout: identity (eval)

        # (TB, 128); padded columns have zero weights and -1e30 bias, so exp()
        # underflows to 0 below.  Log-softmax stays in f32 (correctness).
        logits = jnp.dot(h, w4_ref[...], preferred_element_type=jnp.float32) + b4_ref[...]
        m = jnp.max(logits, axis=1, keepdims=True)
        shifted = logits - m
        lse = jnp.log(jnp.sum(jnp.exp(shifted), axis=1, keepdims=True))
        o_ref[...] = (shifted - lse).astype(o_ref.dtype)

    return net_kernel


def prepare_params(torch_style_params):
    """One-time conversion of PyTorch-layout params:
       - transpose weights (out, in) -> (in, out), cast to bf16
       - pad hidden width 368 -> 384 with zeros (weights and fc1-fc3 biases)
       - pad fc4 output to a lane-dense 128 columns (extra bias columns = -1e30)
       - biases kept f32, shaped (1, D) so they broadcast along sublanes."""
    (w1, b1), (w2, b2), (w3, b3), (w4, b4) = torch_style_params

    def wT(w):
        return jnp.asarray(w, jnp.float32).T.astype(jnp.bfloat16)

    def b2d(b):
        return jnp.asarray(b, jnp.float32).reshape(1, -1)

    # fc1: (368 in, 384 out)
    w1p = jnp.zeros((D_IN, D_H), jnp.bfloat16).at[:, :D_IN].set(wT(w1))
    b1p = jnp.zeros((1, D_H), jnp.float32).at[:, :D_IN].set(b2d(b1))

    # fc2 / fc3: (384 in, 384 out); padded rows/cols zero -> padded units stay 0
    def hidden(w, b):
        wp = jnp.zeros((D_H, D_H), jnp.bfloat16).at[:D_IN, :D_IN].set(wT(w))
        bp = jnp.zeros((1, D_H), jnp.float32).at[:, :D_IN].set(b2d(b))
        return wp, bp

    w2p, b2p = hidden(w2, b2)
    w3p, b3p = hidden(w3, b3)

    # fc4: (384 in, 128 out); padded output columns get -1e30 bias
    w4p = jnp.zeros((D_H, D_OUT_PAD), jnp.bfloat16).at[:D_IN, :D_OUT].set(wT(w4))
    b4p = jnp.full((1, D_OUT_PAD), NEG_BIG, jnp.float32).at[:, :D_OUT].set(b2d(b4))

    return (w1p, b1p, w2p, b2p, w3p, b3p, w4p, b4p)


def _round_up(n, m):
    return ((n + m - 1) // m) * m


def _choose_tb(B):
    """Batch tile: full-array block for tiny B, otherwise >= 2 tiles (rounded to the
    8-row sublane multiple) so the 'parallel' batch axis can shard across v7x's two
    TensorCores, capped at TB_MAX."""
    if B <= 16:
        return B
    tb = _round_up(pl.cdiv(B, 2), 8)
    return min(tb, TB_MAX)


def net_forward(x, prepared_params):
    """x: (B, ...) whose trailing dims flatten to 368, any float dtype.
       Returns f32 (B, 5) log-probabilities."""
    B = x.shape[0]
    x2d = x.reshape(B, -1)
    assert x2d.shape[1] == D_IN

    w1, b1, w2, b2, w3, b3, w4p, b4p = prepared_params

    tb = _choose_tb(B)
    grid = (pl.cdiv(B, tb),)

    def resident(shape):
        # same block every grid step -> weights/biases stay resident in VMEM
        return pl.BlockSpec(shape, lambda i: (0, 0))

    kernel = _make_kernel(_use_bf16_epilogue())

    out_padded = pl.pallas_call(
        kernel,
        # bf16 padded output block halves the output HBM stream (v6e is mem-bound);
        # wrapper casts the 5 real columns back to f32.
        out_shape=jax.ShapeDtypeStruct((B, D_OUT_PAD), jnp.bfloat16),
        grid=grid,
        in_specs=[
            pl.BlockSpec((tb, D_IN), lambda i: (i, 0)),          # x tiles pipeline over batch
            resident((D_IN, D_H)), resident((1, D_H)),            # fc1 (368 -> 384)
            resident((D_H, D_H)), resident((1, D_H)),             # fc2 (384 -> 384)
            resident((D_H, D_H)), resident((1, D_H)),             # fc3 (384 -> 384)
            resident((D_H, D_OUT_PAD)), resident((1, D_OUT_PAD)),  # fc4 (384 -> 128, padded)
        ],
        out_specs=pl.BlockSpec((tb, D_OUT_PAD), lambda i: (i, 0)),
        compiler_params=pltpu.CompilerParams(
            dimension_semantics=("parallel",),       # shard batch tiles across TCs (v7x)
            vmem_limit_bytes=32 * 1024 * 1024,
        ),
    )(x2d, w1, b1, w2, b2, w3, b3, w4p, b4p)

    return out_padded[:, :D_OUT].astype(jnp.float32)


def init_params(key):
    """Deterministic init mirroring the PyTorch module:
       fc1/fc2/fc3 weights = identity (torch.nn.init.eye_), biases = default
       U(-1/sqrt(fan_in), 1/sqrt(fan_in)); fc4 = default Linear init."""
    keys = jax.random.split(key, 6)
    bound = 1.0 / jnp.sqrt(jnp.float32(D_IN))

    eye = jnp.eye(D_IN, dtype=jnp.float32)
    b1 = jax.random.uniform(keys[0], (D_IN,), jnp.float32, -bound, bound)
    b2 = jax.random.uniform(keys[1], (D_IN,), jnp.float32, -bound, bound)
    b3 = jax.random.uniform(keys[2], (D_IN,), jnp.float32, -bound, bound)

    w4 = jax.random.uniform(keys[3], (D_OUT, D_IN), jnp.float32, -bound, bound)
    b4 = jax.random.uniform(keys[4], (D_OUT,), jnp.float32, -bound, bound)

    return ((eye, b1), (eye, b2), (eye, b3), (w4, b4))


def _reference_forward(x, torch_style_params):
    """Pure-JAX f32 reference (eval-mode dropout) for validation."""
    (w1, b1), (w2, b2), (w3, b3), (w4, b4) = torch_style_params
    h = x.reshape(x.shape[0], -1).astype(jnp.float32)
    for w, b in ((w1, b1), (w2, b2), (w3, b3)):
        h = h @ w.T + b
        h = h * (1.0 / (1.0 + jnp.exp(-h)))
    logits = h @ w4.T + b4
    return jax.nn.log_softmax(logits, axis=1)


if __name__ == "__main__":
    key = jax.random.PRNGKey(0)
    pkey, xkey = jax.random.split(key)

    torch_params = init_params(pkey)
    params = prepare_params(torch_params)     # one-time transpose / cast / pad

    # Small example input: batch=4, spatial (23, 16) -> flattens to 368 features.
    B = 4
    x = jax.random.normal(xkey, (B, 23, 16), dtype=jnp.float32)

    out = net_forward(x, params)
    out = jax.block_until_ready(out)

    assert out.shape == (B, D_OUT)
    # log_softmax rows should exponentiate-and-sum to ~1 (bf16 output storage)
    row_sums = jnp.sum(jnp.exp(out), axis=1)
    assert jnp.allclose(row_sums, jnp.ones_like(row_sums), atol=2e-2)
    # bf16 matmuls / storage with f32 accumulation: compare loosely vs f32 reference
    ref = _reference_forward(x, torch_params)
    assert jnp.allclose(out, ref, atol=0.1), float(jnp.max(jnp.abs(out - ref)))

    print("KERNEL_OK")
</pallas_src>

<mosaic_0001>
module attributes {stable_mosaic.version = 11 : i64} {
  func.func @net_kernel(%arg0: i32, %arg1: memref<4x368xf32, #tpu.memory_space<vmem>>, %arg2: memref<368x384xbf16, #tpu.memory_space<vmem>>, %arg3: memref<1x384xf32, #tpu.memory_space<vmem>>, %arg4: memref<384x384xbf16, #tpu.memory_space<vmem>>, %arg5: memref<1x384xf32, #tpu.memory_space<vmem>>, %arg6: memref<384x384xbf16, #tpu.memory_space<vmem>>, %arg7: memref<1x384xf32, #tpu.memory_space<vmem>>, %arg8: memref<384x128xbf16, #tpu.memory_space<vmem>>, %arg9: memref<1x128xf32, #tpu.memory_space<vmem>>, %arg10: memref<4x128xbf16, #tpu.memory_space<vmem>>) attributes {dimension_semantics = [#tpu.dimension_semantics<parallel>], iteration_bounds = array<i64: 1>, scalar_prefetch = 0 : i64, scratch_operands = 0 : i64, tpu.core_type = #tpu.core_type<tc>, window_params = [{transform_indices = @transform_0, window_bounds = array<i64: 4, 368>}, {pipeline_mode = #tpu.pipeline_mode<synchronous>, transform_indices = @transform_1, window_bounds = array<i64: 368, 384>}, {pipeline_mode = #tpu.pipeline_mode<synchronous>, transform_indices = @transform_2, window_bounds = array<i64: 1, 384>}, {pipeline_mode = #tpu.pipeline_mode<synchronous>, transform_indices = @transform_3, window_bounds = array<i64: 384, 384>}, {pipeline_mode = #tpu.pipeline_mode<synchronous>, transform_indices = @transform_4, window_bounds = array<i64: 1, 384>}, {pipeline_mode = #tpu.pipeline_mode<synchronous>, transform_indices = @transform_5, window_bounds = array<i64: 384, 384>}, {pipeline_mode = #tpu.pipeline_mode<synchronous>, transform_indices = @transform_6, window_bounds = array<i64: 1, 384>}, {pipeline_mode = #tpu.pipeline_mode<synchronous>, transform_indices = @transform_7, window_bounds = array<i64: 384, 128>}, {pipeline_mode = #tpu.pipeline_mode<synchronous>, transform_indices = @transform_8, window_bounds = array<i64: 1, 128>}, {transform_indices = @transform_9, window_bounds = array<i64: 4, 128>}]} {
    %c0 = arith.constant 0 : index
    %c0_0 = arith.constant 0 : index
    %0 = vector.load %arg1[%c0, %c0_0] : memref<4x368xf32, #tpu.memory_space<vmem>>, vector<4x368xf32>
    %1 = arith.truncf %0 : vector<4x368xf32> to vector<4x368xbf16>
    %c0_1 = arith.constant 0 : index
    %c0_2 = arith.constant 0 : index
    %2 = vector.load %arg2[%c0_1, %c0_2] : memref<368x384xbf16, #tpu.memory_space<vmem>>, vector<368x384xbf16>
    %cst = arith.constant dense<0.000000e+00> : vector<4x384xf32>
    %3 = tpu.matmul %1, %2, %cst {dimension_numbers = #tpu.dot_dimension_numbers<[1], [0], [0], [1], [0, 0, 1, 1], [], []>} : vector<4x368xbf16>, vector<368x384xbf16>, vector<4x384xf32> -> vector<4x384xf32>
    %4 = arith.truncf %3 : vector<4x384xf32> to vector<4x384xbf16>
    %c0_3 = arith.constant 0 : index
    %c0_4 = arith.constant 0 : index
    %5 = vector.load %arg3[%c0_3, %c0_4] : memref<1x384xf32, #tpu.memory_space<vmem>>, vector<1x384xf32>
    %6 = arith.truncf %5 : vector<1x384xf32> to vector<1x384xbf16>
    %7 = vector.broadcast %6 : vector<1x384xbf16> to vector<4x384xbf16>
    %8 = arith.addf %4, %7 : vector<4x384xbf16>
    %cst_5 = arith.constant 5.000000e-01 : bf16
    %9 = vector.broadcast %cst_5 : bf16 to vector<4x384xbf16>
    %10 = arith.mulf %8, %9 : vector<4x384xbf16>
    %11 = math.tanh %10 : vector<4x384xbf16>
    %cst_6 = arith.constant 1.000000e+00 : bf16
    %12 = vector.broadcast %cst_6 : bf16 to vector<4x384xbf16>
    %13 = arith.addf %11, %12 : vector<4x384xbf16>
    %cst_7 = arith.constant 5.000000e-01 : bf16
    %14 = vector.broadcast %cst_7 : bf16 to vector<4x384xbf16>
    %15 = arith.mulf %14, %13 : vector<4x384xbf16>
    %16 = arith.mulf %8, %15 : vector<4x384xbf16>
    %c0_8 = arith.constant 0 : index
    %c0_9 = arith.constant 0 : index
    %17 = vector.load %arg4[%c0_8, %c0_9] : memref<384x384xbf16, #tpu.memory_space<vmem>>, vector<384x384xbf16>
    %cst_10 = arith.constant dense<0.000000e+00> : vector<4x384xf32>
    %18 = tpu.matmul %16, %17, %cst_10 {dimension_numbers = #tpu.dot_dimension_numbers<[1], [0], [0], [1], [0, 0, 1, 1], [], []>} : vector<4x384xbf16>, vector<384x384xbf16>, vector<4x384xf32> -> vector<4x384xf32>
    %19 = arith.truncf %18 : vector<4x384xf32> to vector<4x384xbf16>
    %c0_11 = arith.constant 0 : index
    %c0_12 = arith.constant 0 : index
    %20 = vector.load %arg5[%c0_11, %c0_12] : memref<1x384xf32, #tpu.memory_space<vmem>>, vector<1x384xf32>
    %21 = arith.truncf %20 : vector<1x384xf32> to vector<1x384xbf16>
    %22 = vector.broadcast %21 : vector<1x384xbf16> to vector<4x384xbf16>
    %23 = arith.addf %19, %22 : vector<4x384xbf16>
    %cst_13 = arith.constant 5.000000e-01 : bf16
    %24 = vector.broadcast %cst_13 : bf16 to vector<4x384xbf16>
    %25 = arith.mulf %23, %24 : vector<4x384xbf16>
    %26 = math.tanh %25 : vector<4x384xbf16>
    %cst_14 = arith.constant 1.000000e+00 : bf16
    %27 = vector.broadcast %cst_14 : bf16 to vector<4x384xbf16>
    %28 = arith.addf %26, %27 : vector<4x384xbf16>
    %cst_15 = arith.constant 5.000000e-01 : bf16
    %29 = vector.broadcast %cst_15 : bf16 to vector<4x384xbf16>
    %30 = arith.mulf %29, %28 : vector<4x384xbf16>
    %31 = arith.mulf %23, %30 : vector<4x384xbf16>
    %c0_16 = arith.constant 0 : index
    %c0_17 = arith.constant 0 : index
    %32 = vector.load %arg6[%c0_16, %c0_17] : memref<384x384xbf16, #tpu.memory_space<vmem>>, vector<384x384xbf16>
    %cst_18 = arith.constant dense<0.000000e+00> : vector<4x384xf32>
    %33 = tpu.matmul %31, %32, %cst_18 {dimension_numbers = #tpu.dot_dimension_numbers<[1], [0], [0], [1], [0, 0, 1, 1], [], []>} : vector<4x384xbf16>, vector<384x384xbf16>, vector<4x384xf32> -> vector<4x384xf32>
    %34 = arith.truncf %33 : vector<4x384xf32> to vector<4x384xbf16>
    %c0_19 = arith.constant 0 : index
    %c0_20 = arith.constant 0 : index
    %35 = vector.load %arg7[%c0_19, %c0_20] : memref<1x384xf32, #tpu.memory_space<vmem>>, vector<1x384xf32>
    %36 = arith.truncf %35 : vector<1x384xf32> to vector<1x384xbf16>
    %37 = vector.broadcast %36 : vector<1x384xbf16> to vector<4x384xbf16>
    %38 = arith.addf %34, %37 : vector<4x384xbf16>
    %cst_21 = arith.constant 5.000000e-01 : bf16
    %39 = vector.broadcast %cst_21 : bf16 to vector<4x384xbf16>
    %40 = arith.mulf %38, %39 : vector<4x384xbf16>
    %41 = math.tanh %40 : vector<4x384xbf16>
    %cst_22 = arith.constant 1.000000e+00 : bf16
    %42 = vector.broadcast %cst_22 : bf16 to vector<4x384xbf16>
    %43 = arith.addf %41, %42 : vector<4x384xbf16>
    %cst_23 = arith.constant 5.000000e-01 : bf16
    %44 = vector.broadcast %cst_23 : bf16 to vector<4x384xbf16>
    %45 = arith.mulf %44, %43 : vector<4x384xbf16>
    %46 = arith.mulf %38, %45 : vector<4x384xbf16>
    %c0_24 = arith.constant 0 : index
    %c0_25 = arith.constant 0 : index
    %47 = vector.load %arg8[%c0_24, %c0_25] : memref<384x128xbf16, #tpu.memory_space<vmem>>, vector<384x128xbf16>
    %cst_26 = arith.constant dense<0.000000e+00> : vector<4x128xf32>
    %48 = tpu.matmul %46, %47, %cst_26 {dimension_numbers = #tpu.dot_dimension_numbers<[1], [0], [0], [1], [0, 0, 1, 1], [], []>} : vector<4x384xbf16>, vector<384x128xbf16>, vector<4x128xf32> -> vector<4x128xf32>
    %c0_27 = arith.constant 0 : index
    %c0_28 = arith.constant 0 : index
    %49 = vector.load %arg9[%c0_27, %c0_28] : memref<1x128xf32, #tpu.memory_space<vmem>>, vector<1x128xf32>
    %50 = vector.broadcast %49 : vector<1x128xf32> to vector<4x128xf32>
    %51 = arith.addf %48, %50 : vector<4x128xf32>
    %cst_29 = arith.constant dense<0xFF800000> : vector<4xf32>
    %52 = vector.multi_reduction <maximumf>, %51, %cst_29 [1] : vector<4x128xf32> to vector<4xf32>
    %53 = vector.shape_cast %52 : vector<4xf32> to vector<4x1xf32>
    %54 = vector.broadcast %53 : vector<4x1xf32> to vector<4x128xf32>
    %55 = arith.subf %51, %54 : vector<4x128xf32>
    %56 = math.exp %55 : vector<4x128xf32>
    %cst_30 = arith.constant dense<0.000000e+00> : vector<4xf32>
    %57 = vector.multi_reduction <add>, %56, %cst_30 [1] : vector<4x128xf32> to vector<4xf32>
    %58 = vector.shape_cast %57 : vector<4xf32> to vector<4x1xf32>
    %59 = math.log %58 : vector<4x1xf32>
    %60 = vector.broadcast %59 : vector<4x1xf32> to vector<4x128xf32>
    %61 = arith.subf %55, %60 : vector<4x128xf32>
    %62 = arith.truncf %61 : vector<4x128xf32> to vector<4x128xbf16>
    %c0_31 = arith.constant 0 : index
    %c0_32 = arith.constant 0 : index
    %63 = vector.load %arg10[%c0_31, %c0_32] : memref<4x128xbf16, #tpu.memory_space<vmem>>, vector<4x128xbf16>
    tpu.vector_store %arg10[%c0_31, %c0_32], %62 {strides = array<i32>} : memref<4x128xbf16, #tpu.memory_space<vmem>>, vector<4x128xbf16>,
    return
  }
  func.func @transform_0(%arg0: i32) -> (i32, i32) {
    %c0_i32 = arith.constant 0 : i32
    %c0_i32_0 = arith.constant 0 : i32
    return %arg0, %c0_i32 : i32, i32
  }
  func.func @transform_1(%arg0: i32) -> (i32, i32) {
    %c0_i32 = arith.constant 0 : i32
    %c0_i32_0 = arith.constant 0 : i32
    %c0_i32_1 = arith.constant 0 : i32
    return %c0_i32, %c0_i32_0 : i32, i32
  }
  func.func @transform_2(%arg0: i32) -> (i32, i32) {
    %c0_i32 = arith.constant 0 : i32
    %c0_i32_0 = arith.constant 0 : i32
    %c0_i32_1 = arith.constant 0 : i32
    return %c0_i32, %c0_i32_0 : i32, i32
  }
  func.func @transform_3(%arg0: i32) -> (i32, i32) {
    %c0_i32 = arith.constant 0 : i32
    %c0_i32_0 = arith.constant 0 : i32
    %c0_i32_1 = arith.constant 0 : i32
    return %c0_i32, %c0_i32_0 : i32, i32
  }
  func.func @transform_4(%arg0: i32) -> (i32, i32) {
    %c0_i32 = arith.constant 0 : i32
    %c0_i32_0 = arith.constant 0 : i32
    %c0_i32_1 = arith.constant 0 : i32
    return %c0_i32, %c0_i32_0 : i32, i32
  }
  func.func @transform_5(%arg0: i32) -> (i32, i32) {
    %c0_i32 = arith.constant 0 : i32
    %c0_i32_0 = arith.constant 0 : i32
    %c0_i32_1 = arith.constant 0 : i32
    return %c0_i32, %c0_i32_0 : i32, i32
  }
  func.func @transform_6(%arg0: i32) -> (i32, i32) {
    %c0_i32 = arith.constant 0 : i32
    %c0_i32_0 = arith.constant 0 : i32
    %c0_i32_1 = arith.constant 0 : i32
    return %c0_i32, %c0_i32_0 : i32, i32
  }
  func.func @transform_7(%arg0: i32) -> (i32, i32) {
    %c0_i32 = arith.constant 0 : i32
    %c0_i32_0 = arith.constant 0 : i32
    %c0_i32_1 = arith.constant 0 : i32
    return %c0_i32, %c0_i32_0 : i32, i32
  }
  func.func @transform_8(%arg0: i32) -> (i32, i32) {
    %c0_i32 = arith.constant 0 : i32
    %c0_i32_0 = arith.constant 0 : i32
    %c0_i32_1 = arith.constant 0 : i32
    return %c0_i32, %c0_i32_0 : i32, i32
  }
  func.func @transform_9(%arg0: i32) -> (i32, i32) {
    %c0_i32 = arith.constant 0 : i32
    %c0_i32_0 = arith.constant 0 : i32
    return %arg0, %c0_i32 : i32, i32
  }
}

</mosaic_0001>

<llo_original>
// kernel: tpu_custom_call.1
$region0: #{tpu_custom_call.1}
  #allocation0 [shape = 'u32[]', space=smem, size = 0x4, offset = 0x4, fixed_abs, tag = 'smem constant byte address 0x4 - core index']
  #allocation1 [shape = 'u32[144,128]{1,0:T(1,128)}', space=vmem, size = 0x12000, scoped, tag = 'internal scratch']
  %s0 = inlined_call_operand.hbm [shape: f32[4,368], index: 0, kind: input, shape index: {}]
  %s1 = inlined_call_operand.hbm [shape: bf16[368,384], index: 1, kind: input, shape index: {}]
  %s2 = inlined_call_operand.vmem [shape: f32[1,384], index: 2, kind: input, shape index: {}]
  %s3 = inlined_call_operand.hbm [shape: bf16[384,384], index: 3, kind: input, shape index: {}]
  %s4 = inlined_call_operand.vmem [shape: f32[1,384], index: 4, kind: input, shape index: {}]
  %s5 = inlined_call_operand.hbm [shape: bf16[384,384], index: 5, kind: input, shape index: {}]
  %s6 = inlined_call_operand.vmem [shape: f32[1,384], index: 6, kind: input, shape index: {}]
  %s7 = inlined_call_operand.hbm [shape: bf16[384,128], index: 7, kind: input, shape index: {}]
  %s8 = inlined_call_operand.vmem [shape: f32[1,128], index: 8, kind: input, shape index: {}]
  %s9 = inlined_call_operand.hbm [shape: bf16[4,128], index: 9, kind: output, shape index: {}]
  %s10 = sld [smem:[#allocation0]]
  $region66: #{tpu_custom_call.1} parent=0
    _
  %s12 = ssub.s32 1, %s10
  %s13 = scalar_select 0, %s12, %s10
  $region1: #{tpu_custom_call.1} parent=0
    #allocation2 [shape = 'u8[6144]{0}', space=vmem, size = 0x1800, scoped, tag = 'input window, operand 0, single buffered']
    #allocation3 [shape = 's32[1]{0}', space=sflag, size = 0x4, scoped, tag = 'scoped memory for tpu_custom_call.1']
    #allocation4 [shape = 's32[1]{0}', space=sflag, size = 0x4, scoped, tag = 'scoped memory for tpu_custom_call.1']
    #allocation5 [shape = 'u8[282624]{0}', space=vmem, size = 0x45000, scoped, tag = 'input window, operand 1, single buffered']
    #allocation6 [shape = 's32[1]{0}', space=sflag, size = 0x4, scoped, tag = 'scoped memory for tpu_custom_call.1']
    #allocation7 [shape = 'u8[294912]{0}', space=vmem, size = 0x48000, scoped, tag = 'input window, operand 3, single buffered']
    #allocation8 [shape = 'u8[294912]{0}', space=vmem, size = 0x48000, scoped, tag = 'input window, operand 5, single buffered']
    #allocation9 [shape = 's32[1]{0}', space=sflag, size = 0x4, scoped, tag = 'scoped memory for tpu_custom_call.1']
    #allocation10 [shape = 'u8[98304]{0}', space=vmem, size = 0x18000, scoped, tag = 'input window, operand 7, single buffered']
    #allocation11 [shape = 'u8[1024]{0}', space=vmem, size = 0x400, scoped, tag = 'output window, operand 0, single buffered']
    %14 = vsyncpa [#allocation3], 0
    %15 = vsyncpa [#allocation6], 0
    %16 = vsyncpa [#allocation9], 0
    %17 = vsyncpa [#allocation4], 0
    // Predicated region
    $region2: #{tpu_custom_call.1} parent=1 // pred_check
      _
    $region3: #{tpu_custom_call.1} parent=1 // pred_check_branch
      %19 = sbr.rel (0) target = $region5
    $region4: #{tpu_custom_call.1} parent=1 // pred_region
      %s21 = ssub.s32 192, 192
      %22 = vsyncadd [#allocation3], %s21
      %s24 = sshll.u32 [#allocation2], 4
      %s25 = int_to_ptr.vmem [resolvable:$true] %s24
      %27 = dma.hbm_to_vmem [thread:$0]  %s0, 192, %s25, [#allocation3]
    $region5: #{tpu_custom_call.1} parent=1 // pred_fallthru
      _
    // Predicated region
    $region6: #{tpu_custom_call.1} parent=1 // pred_check
      _
    $region7: #{tpu_custom_call.1} parent=1 // pred_check_branch
      %29 = sbr.rel (0) target = $region9
    $region8: #{tpu_custom_call.1} parent=1 // pred_region
      %s31 = ssub.s32 8832, 8832
      %32 = vsyncadd [#allocation6], %s31
      %s33 = sshll.u32 [#allocation5], 4
      %s34 = int_to_ptr.vmem [resolvable:$true] %s33
      %39 = dma.hbm_to_vmem [thread:$0]  %s1, 8832, %s34, [#allocation6], 192, 192, 12
    $region9: #{tpu_custom_call.1} parent=1 // pred_fallthru
      _
    // Predicated region
    $region10: #{tpu_custom_call.1} parent=1 // pred_check
      _
    $region11: #{tpu_custom_call.1} parent=1 // pred_check_branch
      %41 = sbr.rel (0) target = $region13
    $region12: #{tpu_custom_call.1} parent=1 // pred_region
      _
    $region13: #{tpu_custom_call.1} parent=1 // pred_fallthru
      _
    // Predicated region
    $region14: #{tpu_custom_call.1} parent=1 // pred_check
      _
    $region15: #{tpu_custom_call.1} parent=1 // pred_check_branch
      %43 = sbr.rel (0) target = $region17
    $region16: #{tpu_custom_call.1} parent=1 // pred_region
      %s45 = ssub.s32 9216, 9216
      %46 = vsyncadd [#allocation6], %s45
      %s47 = sshll.u32 [#allocation7], 4
      %s48 = int_to_ptr.vmem [resolvable:$true] %s47
      %53 = dma.hbm_to_vmem [thread:$0]  %s3, 9216, %s48, [#allocation6], 192, 192, 12
    $region17: #{tpu_custom_call.1} parent=1 // pred_fallthru
      _
    // Predicated region
    $region18: #{tpu_custom_call.1} parent=1 // pred_check
      _
    $region19: #{tpu_custom_call.1} parent=1 // pred_check_branch
      %55 = sbr.rel (0) target = $region21
    $region20: #{tpu_custom_call.1} parent=1 // pred_region
      _
    $region21: #{tpu_custom_call.1} parent=1 // pred_fallthru
      _
    // Predicated region
    $region22: #{tpu_custom_call.1} parent=1 // pred_check
      _
    $region23: #{tpu_custom_call.1} parent=1 // pred_check_branch
      %57 = sbr.rel (0) target = $region25
    $region24: #{tpu_custom_call.1} parent=1 // pred_region
      %s59 = ssub.s32 9216, 9216
      %60 = vsyncadd [#allocation9], %s59
      %s61 = sshll.u32 [#allocation8], 4
      %s62 = int_to_ptr.vmem [resolvable:$true] %s61
      %67 = dma.hbm_to_vmem [thread:$0]  %s5, 9216, %s62, [#allocation9], 192, 192, 12
    $region25: #{tpu_custom_call.1} parent=1 // pred_fallthru
      _
    // Predicated region
    $region26: #{tpu_custom_call.1} parent=1 // pred_check
      _
    $region27: #{tpu_custom_call.1} parent=1 // pred_check_branch
      %69 = sbr.rel (0) target = $region29
    $region28: #{tpu_custom_call.1} parent=1 // pred_region
      _
    $region29: #{tpu_custom_call.1} parent=1 // pred_fallthru
      _
    // Predicated region
    $region30: #{tpu_custom_call.1} parent=1 // pred_check
      _
    $region31: #{tpu_custom_call.1} parent=1 // pred_check_branch
      %71 = sbr.rel (0) target = $region33
    $region32: #{tpu_custom_call.1} parent=1 // pred_region
      %s73 = ssub.s32 3072, 3072
      %74 = vsyncadd [#allocation9], %s73
      %s75 = sshll.u32 [#allocation10], 4
      %s76 = int_to_ptr.vmem [resolvable:$true] %s75
      %81 = dma.hbm_to_vmem [thread:$0]  %s7, 3072, %s76, [#allocation9], 64, 64, 4
    $region33: #{tpu_custom_call.1} parent=1 // pred_fallthru
      _
    // Predicated region
    $region34: #{tpu_custom_call.1} parent=1 // pred_check
      _
    $region35: #{tpu_custom_call.1} parent=1 // pred_check_branch
      %83 = sbr.rel (0) target = $region37
    $region36: #{tpu_custom_call.1} parent=1 // pred_region
      _
    $region37: #{tpu_custom_call.1} parent=1 // pred_fallthru
      _
    // Predicated region
    $region38: #{tpu_custom_call.1} parent=1 // pred_check
      _
    $region39: #{tpu_custom_call.1} parent=1 // pred_check_branch
      %85 = sbr.rel (0) target = $region41
    $region40: #{tpu_custom_call.1} parent=1 // pred_region
      %86 = dma.done [#allocation3], 192
    $region41: #{tpu_custom_call.1} parent=1 // pred_fallthru
      _
    // Predicated region
    $region42: #{tpu_custom_call.1} parent=1 // pred_check
      _
    $region43: #{tpu_custom_call.1} parent=1 // pred_check_branch
      %88 = sbr.rel (0) target = $region45
    $region44: #{tpu_custom_call.1} parent=1 // pred_region
      %89 = dma.done [#allocation6], 8832
    $region45: #{tpu_custom_call.1} parent=1 // pred_fallthru
      _
    // Predicated region
    $region46: #{tpu_custom_call.1} parent=1 // pred_check
      _
    $region47: #{tpu_custom_call.1} parent=1 // pred_check_branch
      %91 = sbr.rel (0) target = $region49
    $region48: #{tpu_custom_call.1} parent=1 // pred_region
      %92 = dma.done [#allocation6], 9216
    $region49: #{tpu_custom_call.1} parent=1 // pred_fallthru
      _
    // Predicated region
    $region50: #{tpu_custom_call.1} parent=1 // pred_check
      _
    $region51: #{tpu_custom_call.1} parent=1 // pred_check_branch
      %94 = sbr.rel (0) target = $region53
    $region52: #{tpu_custom_call.1} parent=1 // pred_region
      %95 = dma.done [#allocation9], 9216
    $region53: #{tpu_custom_call.1} parent=1 // pred_fallthru
      _
    // Predicated region
    $region54: #{tpu_custom_call.1} parent=1 // pred_check
      _
    $region55: #{tpu_custom_call.1} parent=1 // pred_check_branch
      %97 = sbr.rel (0) target = $region57
    $region56: #{tpu_custom_call.1} parent=1 // pred_region
      %98 = dma.done [#allocation9], 3072
    $region57: #{tpu_custom_call.1} parent=1 // pred_fallthru
      _
    %v102 = vld [vmem:[#allocation2] sm:$0xff]
    %v103 = vld [vmem:[#allocation2 + $0x8] sm:$0xf]
    %v105 = vcombine.high %v102, %v102
    %v107 = vpack.c.bf16 %v102, %v102
    %v108 = vpack.c.bf16 %v105, %v105
    %v109 = vpack.c.bf16 %v103, %v103
    %v110 = vld [vmem:[#allocation5] sm:$0xff]
    %v111 = vld [vmem:[#allocation5 + $0x8] sm:$0xf]
    %v112 = vld [vmem:[#allocation5 + $0xc] sm:$0xff]
    %v113 = vld [vmem:[#allocation5 + $0x14] sm:$0xf]
    %v114 = vld [vmem:[#allocation5 + $0x18] sm:$0xff]
    %v115 = vld [vmem:[#allocation5 + $0x20] sm:$0xf]
    %v116 = vld [vmem:[#allocation5 + $0x24] sm:$0xff]
    %v117 = vld [vmem:[#allocation5 + $0x2c] sm:$0xf]
    %v118 = vld [vmem:[#allocation5 + $0x30] sm:$0xff]
    %v119 = vld [vmem:[#allocation5 + $0x38] sm:$0xf]
    %v120 = vld [vmem:[#allocation5 + $0x3c] sm:$0xff]
    %v121 = vld [vmem:[#allocation5 + $0x44] sm:$0xf]
    %v122 = vld [vmem:[#allocation5 + $0x48] sm:$0xff]
    %v123 = vld [vmem:[#allocation5 + $0x50] sm:$0xf]
    %v124 = vld [vmem:[#allocation5 + $0x54] sm:$0xff]
    %v125 = vld [vmem:[#allocation5 + $0x5c] sm:$0xf]
    %v126 = vld [vmem:[#allocation5 + $0x60] sm:$0xff]
    %v127 = vld [vmem:[#allocation5 + $0x68] sm:$0xf]
    %v128 = vld [vmem:[#allocation5 + $0x6c] sm:$0xff]
    %v129 = vld [vmem:[#allocation5 + $0x74] sm:$0xf]
    %v130 = vld [vmem:[#allocation5 + $0x78] sm:$0xff]
    %v131 = vld [vmem:[#allocation5 + $0x80] sm:$0xf]
    %v132 = vld [vmem:[#allocation5 + $0x84] sm:$0xff]
    %v133 = vld [vmem:[#allocation5 + $0x8c] sm:$0xf]
    %v134 = vld [vmem:[#allocation5 + $0x90] sm:$0xff]
    %v135 = vld [vmem:[#allocation5 + $0x98] sm:$0xf]
    %v136 = vld [vmem:[#allocation5 + $0x9c] sm:$0xff]
    %v137 = vld [vmem:[#allocation5 + $0xa4] sm:$0xf]
    %v138 = vld [vmem:[#allocation5 + $0xa8] sm:$0xff]
    %v139 = vld [vmem:[#allocation5 + $0xb0] sm:$0xf]
    %v140 = vld [vmem:[#allocation5 + $0xb4] sm:$0xff]
    %v141 = vld [vmem:[#allocation5 + $0xbc] sm:$0xf]
    %v142 = vld [vmem:[#allocation5 + $0xc0] sm:$0xff]
    %v143 = vld [vmem:[#allocation5 + $0xc8] sm:$0xf]
    %v144 = vld [vmem:[#allocation5 + $0xcc] sm:$0xff]
    %v145 = vld [vmem:[#allocation5 + $0xd4] sm:$0xf]
    %v146 = vld [vmem:[#allocation5 + $0xd8] sm:$0xff]
    %v147 = vld [vmem:[#allocation5 + $0xe0] sm:$0xf]
    %v148 = vld [vmem:[#allocation5 + $0xe4] sm:$0xff]
    %v149 = vld [vmem:[#allocation5 + $0xec] sm:$0xf]
    %v150 = vld [vmem:[#allocation5 + $0xf0] sm:$0xff]
    %v151 = vld [vmem:[#allocation5 + $0xf8] sm:$0xf]
    %v152 = vld [vmem:[#allocation5 + $0xfc] sm:$0xff]
    %v153 = vld [vmem:[#allocation5 + $0x104] sm:$0xf]
    %v154 = vld [vmem:[#allocation5 + $0x108] sm:$0xff]
    %v155 = vld [vmem:[#allocation5 + $0x110] sm:$0xf]
    %v156 = vld [vmem:[#allocation5 + $0x114] sm:$0xff]
    %v157 = vld [vmem:[#allocation5 + $0x11c] sm:$0xf]
    %v158 = vld [vmem:[#allocation5 + $0x120] sm:$0xff]
    %v159 = vld [vmem:[#allocation5 + $0x128] sm:$0xf]
    %v160 = vld [vmem:[#allocation5 + $0x12c] sm:$0xff]
    %v161 = vld [vmem:[#allocation5 + $0x134] sm:$0xf]
    %v162 = vld [vmem:[#allocation5 + $0x138] sm:$0xff]
    %v163 = vld [vmem:[#allocation5 + $0x140] sm:$0xf]
    %v164 = vld [vmem:[#allocation5 + $0x144] sm:$0xff]
    %v165 = vld [vmem:[#allocation5 + $0x14c] sm:$0xf]
    %v166 = vld [vmem:[#allocation5 + $0x150] sm:$0xff]
    %v167 = vld [vmem:[#allocation5 + $0x158] sm:$0xf]
    %v168 = vld [vmem:[#allocation5 + $0x15c] sm:$0xff]
    %v169 = vld [vmem:[#allocation5 + $0x164] sm:$0xf]
    %v170 = vld [vmem:[#allocation5 + $0x168] sm:$0xff]
    %v171 = vld [vmem:[#allocation5 + $0x170] sm:$0xf]
    %v172 = vld [vmem:[#allocation5 + $0x174] sm:$0xff]
    %v173 = vld [vmem:[#allocation5 + $0x17c] sm:$0xf]
    %v174 = vld [vmem:[#allocation5 + $0x180] sm:$0xff]
    %v175 = vld [vmem:[#allocation5 + $0x188] sm:$0xf]
    %v176 = vld [vmem:[#allocation5 + $0x18c] sm:$0xff]
    %v177 = vld [vmem:[#allocation5 + $0x194] sm:$0xf]
    %v178 = vld [vmem:[#allocation5 + $0x198] sm:$0xff]
    %v179 = vld [vmem:[#allocation5 + $0x1a0] sm:$0xf]
    %v180 = vld [vmem:[#allocation5 + $0x1a4] sm:$0xff]
    %v181 = vld [vmem:[#allocation5 + $0x1ac] sm:$0xf]
    %v182 = vld [vmem:[#allocation5 + $0x1b0] sm:$0xff]
    %v183 = vld [vmem:[#allocation5 + $0x1b8] sm:$0xf]
    %v184 = vld [vmem:[#allocation5 + $0x1bc] sm:$0xff]
    %v185 = vld [vmem:[#allocation5 + $0x1c4] sm:$0xf]
    %v186 = vld [vmem:[#allocation5 + $0x1c8] sm:$0xff]
    %v187 = vld [vmem:[#allocation5 + $0x1d0] sm:$0xf]
    %v188 = vld [vmem:[#allocation5 + $0x1d4] sm:$0xff]
    %v189 = vld [vmem:[#allocation5 + $0x1dc] sm:$0xf]
    %v190 = vld [vmem:[#allocation5 + $0x1e0] sm:$0xff]
    %v191 = vld [vmem:[#allocation5 + $0x1e8] sm:$0xf]
    %v192 = vld [vmem:[#allocation5 + $0x1ec] sm:$0xff]
    %v193 = vld [vmem:[#allocation5 + $0x1f4] sm:$0xf]
    %v194 = vld [vmem:[#allocation5 + $0x1f8] sm:$0xff]
    %v195 = vld [vmem:[#allocation5 + $0x200] sm:$0xf]
    %v196 = vld [vmem:[#allocation5 + $0x204] sm:$0xff]
    %v197 = vld [vmem:[#allocation5 + $0x20c] sm:$0xf]
    %v198 = vld [vmem:[#allocation5 + $0x210] sm:$0xff]
    %v199 = vld [vmem:[#allocation5 + $0x218] sm:$0xf]
    %v200 = vld [vmem:[#allocation5 + $0x21c] sm:$0xff]
    %v201 = vld [vmem:[#allocation5 + $0x224] sm:$0xf]
    %v294 = vunpack.c.l.b16 %v110
    %v295 = vunpack.c.h.b16 %v110
    %v296 = vunpack.c.l.b16 %v111
    %v297 = vunpack.c.l.b16 %v112
    %v298 = vunpack.c.h.b16 %v112
    %v299 = vunpack.c.l.b16 %v113
    %v300 = vunpack.c.l.b16 %v114
    %v301 = vunpack.c.h.b16 %v114
    %v302 = vunpack.c.l.b16 %v115
    %v303 = vunpack.c.l.b16 %v116
    %v304 = vunpack.c.h.b16 %v116
    %v305 = vunpack.c.l.b16 %v117
    %v306 = vunpack.c.l.b16 %v118
    %v307 = vunpack.c.h.b16 %v118
    %v308 = vunpack.c.l.b16 %v119
    %v309 = vunpack.c.l.b16 %v120
    %v310 = vunpack.c.h.b16 %v120
    %v311 = vunpack.c.l.b16 %v121
    %v312 = vunpack.c.l.b16 %v122
    %v313 = vunpack.c.h.b16 %v122
    %v314 = vunpack.c.l.b16 %v123
    %v315 = vunpack.c.l.b16 %v124
    %v316 = vunpack.c.h.b16 %v124
    %v317 = vunpack.c.l.b16 %v125
    %v318 = vunpack.c.l.b16 %v126
    %v319 = vunpack.c.h.b16 %v126
    %v320 = vunpack.c.l.b16 %v127
    %v321 = vunpack.c.l.b16 %v128
    %v322 = vunpack.c.h.b16 %v128
    %v323 = vunpack.c.l.b16 %v129
    %v324 = vunpack.c.l.b16 %v130
    %v325 = vunpack.c.h.b16 %v130
    %v326 = vunpack.c.l.b16 %v131
    %v327 = vunpack.c.l.b16 %v132
    %v328 = vunpack.c.h.b16 %v132
    %v329 = vunpack.c.l.b16 %v133
    %v330 = vunpack.c.l.b16 %v134
    %v331 = vunpack.c.h.b16 %v134
    %v332 = vunpack.c.l.b16 %v135
    %v333 = vunpack.c.l.b16 %v136
    %v334 = vunpack.c.h.b16 %v136
    %v335 = vunpack.c.l.b16 %v137
    %v336 = vunpack.c.l.b16 %v138
    %v337 = vunpack.c.h.b16 %v138
    %v338 = vunpack.c.l.b16 %v139
    %v339 = vunpack.c.l.b16 %v140
    %v340 = vunpack.c.h.b16 %v140
    %v341 = vunpack.c.l.b16 %v141
    %v342 = vunpack.c.l.b16 %v142
    %v343 = vunpack.c.h.b16 %v142
    %v344 = vunpack.c.l.b16 %v143
    %v345 = vunpack.c.l.b16 %v144
    %v346 = vunpack.c.h.b16 %v144
    %v347 = vunpack.c.l.b16 %v145
    %v348 = vunpack.c.l.b16 %v146
    %v349 = vunpack.c.h.b16 %v146
    %v350 = vunpack.c.l.b16 %v147
    %v351 = vunpack.c.l.b16 %v148
    %v352 = vunpack.c.h.b16 %v148
    %v353 = vunpack.c.l.b16 %v149
    %v354 = vunpack.c.l.b16 %v150
    %v355 = vunpack.c.h.b16 %v150
    %v356 = vunpack.c.l.b16 %v151
    %v357 = vunpack.c.l.b16 %v152
    %v358 = vunpack.c.h.b16 %v152
    %v359 = vunpack.c.l.b16 %v153
    %v360 = vunpack.c.l.b16 %v154
    %v361 = vunpack.c.h.b16 %v154
    %v362 = vunpack.c.l.b16 %v155
    %v363 = vunpack.c.l.b16 %v156
    %v364 = vunpack.c.h.b16 %v156
    %v365 = vunpack.c.l.b16 %v157
    %v366 = vunpack.c.l.b16 %v158
    %v367 = vunpack.c.h.b16 %v158
    %v368 = vunpack.c.l.b16 %v159
    %v369 = vunpack.c.l.b16 %v160
    %v370 = vunpack.c.h.b16 %v160
    %v371 = vunpack.c.l.b16 %v161
    %v372 = vunpack.c.l.b16 %v162
    %v373 = vunpack.c.h.b16 %v162
    %v374 = vunpack.c.l.b16 %v163
    %v375 = vunpack.c.l.b16 %v164
    %v376 = vunpack.c.h.b16 %v164
    %v377 = vunpack.c.l.b16 %v165
    %v378 = vunpack.c.l.b16 %v166
    %v379 = vunpack.c.h.b16 %v166
    %v380 = vunpack.c.l.b16 %v167
    %v381 = vunpack.c.l.b16 %v168
    %v382 = vunpack.c.h.b16 %v168
    %v383 = vunpack.c.l.b16 %v169
    %v384 = vunpack.c.l.b16 %v170
    %v385 = vunpack.c.h.b16 %v170
    %v386 = vunpack.c.l.b16 %v171
    %v387 = vunpack.c.l.b16 %v172
    %v388 = vunpack.c.h.b16 %v172
    %v389 = vunpack.c.l.b16 %v173
    %v390 = vunpack.c.l.b16 %v174
    %v391 = vunpack.c.h.b16 %v174
    %v392 = vunpack.c.l.b16 %v175
    %v393 = vunpack.c.l.b16 %v176
    %v394 = vunpack.c.h.b16 %v176
    %v395 = vunpack.c.l.b16 %v177
    %v396 = vunpack.c.l.b16 %v178
    %v397 = vunpack.c.h.b16 %v178
    %v398 = vunpack.c.l.b16 %v179
    %v399 = vunpack.c.l.b16 %v180
    %v400 = vunpack.c.h.b16 %v180
    %v401 = vunpack.c.l.b16 %v181
    %v402 = vunpack.c.l.b16 %v182
    %v403 = vunpack.c.h.b16 %v182
    %v404 = vunpack.c.l.b16 %v183
    %v405 = vunpack.c.l.b16 %v184
    %v406 = vunpack.c.h.b16 %v184
    %v407 = vunpack.c.l.b16 %v185
    %v408 = vunpack.c.l.b16 %v186
    %v409 = vunpack.c.h.b16 %v186
    %v410 = vunpack.c.l.b16 %v187
    %v411 = vunpack.c.l.b16 %v188
    %v412 = vunpack.c.h.b16 %v188
    %v413 = vunpack.c.l.b16 %v189
    %v414 = vunpack.c.l.b16 %v190
    %v415 = vunpack.c.h.b16 %v190
    %v416 = vunpack.c.l.b16 %v191
    %v417 = vunpack.c.l.b16 %v192
    %v418 = vunpack.c.h.b16 %v192
    %v419 = vunpack.c.l.b16 %v193
    %v420 = vunpack.c.l.b16 %v194
    %v421 = vunpack.c.h.b16 %v194
    %v422 = vunpack.c.l.b16 %v195
    %v423 = vunpack.c.l.b16 %v196
    %v424 = vunpack.c.h.b16 %v196
    %v425 = vunpack.c.l.b16 %v197
    %v426 = vunpack.c.l.b16 %v198
    %v427 = vunpack.c.h.b16 %v198
    %v428 = vunpack.c.l.b16 %v199
    %v429 = vunpack.c.l.b16 %v200
    %v430 = vunpack.c.h.b16 %v200
    %v431 = vunpack.c.l.b16 %v201
    %v432 = vpack.c.b16 %v297, %v294
    %v433 = vpack.c.b16 %v298, %v295
    %v434 = vpack.c.b16 %v299, %v296
    %v435 = vpack.c.b16 %v303, %v300
    %v436 = vpack.c.b16 %v304, %v301
    %v437 = vpack.c.b16 %v305, %v302
    %v438 = vpack.c.b16 %v309, %v306
    %v439 = vpack.c.b16 %v310, %v307
    %v440 = vpack.c.b16 %v311, %v308
    %v441 = vpack.c.b16 %v315, %v312
    %v442 = vpack.c.b16 %v316, %v313
    %v443 = vpack.c.b16 %v317, %v314
    %v444 = vpack.c.b16 %v321, %v318
    %v445 = vpack.c.b16 %v322, %v319
    %v446 = vpack.c.b16 %v323, %v320
    %v447 = vpack.c.b16 %v327, %v324
    %v448 = vpack.c.b16 %v328, %v325
    %v449 = vpack.c.b16 %v329, %v326
    %v450 = vpack.c.b16 %v333, %v330
    %v451 = vpack.c.b16 %v334, %v331
    %v452 = vpack.c.b16 %v335, %v332
    %v453 = vpack.c.b16 %v339, %v336
    %v454 = vpack.c.b16 %v340, %v337
    %v455 = vpack.c.b16 %v341, %v338
    %v456 = vpack.c.b16 %v345, %v342
    %v457 = vpack.c.b16 %v346, %v343
    %v458 = vpack.c.b16 %v347, %v344
    %v459 = vpack.c.b16 %v351, %v348
    %v460 = vpack.c.b16 %v352, %v349
    %v461 = vpack.c.b16 %v353, %v350
    %v462 = vpack.c.b16 %v357, %v354
    %v463 = vpack.c.b16 %v358, %v355
    %v464 = vpack.c.b16 %v359, %v356
    %v465 = vpack.c.b16 %v363, %v360
    %v466 = vpack.c.b16 %v364, %v361
    %v467 = vpack.c.b16 %v365, %v362
    %v468 = vpack.c.b16 %v369, %v366
    %v469 = vpack.c.b16 %v370, %v367
    %v470 = vpack.c.b16 %v371, %v368
    %v471 = vpack.c.b16 %v375, %v372
    %v472 = vpack.c.b16 %v376, %v373
    %v473 = vpack.c.b16 %v377, %v374
    %v474 = vpack.c.b16 %v381, %v378
    %v475 = vpack.c.b16 %v382, %v379
    %v476 = vpack.c.b16 %v383, %v380
    %v477 = vpack.c.b16 %v387, %v384
    %v478 = vpack.c.b16 %v388, %v385
    %v479 = vpack.c.b16 %v389, %v386
    %v480 = vpack.c.b16 %v393, %v390
    %v481 = vpack.c.b16 %v394, %v391
    %v482 = vpack.c.b16 %v395, %v392
    %v483 = vpack.c.b16 %v399, %v396
    %v484 = vpack.c.b16 %v400, %v397
    %v485 = vpack.c.b16 %v401, %v398
    %v486 = vpack.c.b16 %v405, %v402
    %v487 = vpack.c.b16 %v406, %v403
    %v488 = vpack.c.b16 %v407, %v404
    %v489 = vpack.c.b16 %v411, %v408
    %v490 = vpack.c.b16 %v412, %v409
    %v491 = vpack.c.b16 %v413, %v410
    %v492 = vpack.c.b16 %v417, %v414
    %v493 = vpack.c.b16 %v418, %v415
    %v494 = vpack.c.b16 %v419, %v416
    %v495 = vpack.c.b16 %v423, %v420
    %v496 = vpack.c.b16 %v424, %v421
    %v497 = vpack.c.b16 %v425, %v422
    %v498 = vpack.c.b16 %v429, %v426
    %v499 = vpack.c.b16 %v430, %v427
    %v500 = vpack.c.b16 %v431, %v428
    %vm570 = vcmask 916480
    %v572 = vsel %vm570, %v109, 0
    %574 = vmatprep.subr.bf16.mxu0 %v433
    %575 = vmatpush1.bf16.msra.mxu0 %v432
    %576 = vmatprep.subr.bf16.mxu0 %v436
    %577 = vmatpush1.bf16.msra.mxu0 %v435
    %578 = vmatprep.subr.bf16.mxu0 %v439
    %579 = vmatpush1.bf16.msra.mxu0 %v438
    %580 = vmatprep.subr.bf16.mxu0 %v442
    %581 = vmatpush1.bf16.msra.mxu0 %v441
    %582 = vmatprep.subr.bf16.mxu0 %v445
    %583 = vmatpush1.bf16.msra.mxu0 %v444
    %584 = vmatprep.subr.bf16.mxu0 %v448
    %585 = vmatpush1.bf16.msra.mxu0 %v447
    %586 = vmatprep.subr.bf16.mxu0 %v451
    %587 = vmatpush1.bf16.msra.mxu0 %v450
    %588 = vmatprep.subr.bf16.mxu0 %v454
    %589 = vmatpush1.bf16.msra.mxu0 %v453
    %590 = vmatprep.subr.bf16.mxu0 %v457
    %591 = vmatpush1.bf16.msra.mxu0 %v456
    %592 = vmatprep.subr.bf16.mxu0 %v460
    %593 = vmatpush1.bf16.msra.mxu0 %v459
    %594 = vmatprep.subr.bf16.mxu0 %v463
    %595 = vmatpush1.bf16.msra.mxu0 %v462
    %596 = vmatprep.subr.bf16.mxu0 %v466
    %597 = vmatpush1.bf16.msra.mxu0 %v465
    %598 = vmatprep.subr.bf16.mxu0 %v469
    %599 = vmatpush1.bf16.msra.mxu0 %v468
    %600 = vmatprep.subr.bf16.mxu0 %v472
    %601 = vmatpush1.bf16.msra.mxu0 %v471
    %602 = vmatprep.subr.bf16.mxu0 %v475
    %603 = vmatpush1.bf16.msra.mxu0 %v474
    %604 = vmatprep.subr.bf16.mxu0 %v478
    %605 = vmatpush1.bf16.msra.mxu0 %v477
    %606 = vmatprep.mubr.bf16.mxu0 %v108
    %607 = vmatmul.mubr.bf16.gmra.mrb[0].mxu0 %v107
    %v608 = vpop.f32.mrb[0].mxu0
    %v609 = vadd.f32 0.0, %v608
    %v610 = vpop.f32.mrb[0].mxu0
    %v611 = vadd.f32 0.0, %v610
    %v612 = vpop.f32.mrb[0].mxu0
    %v613 = vpop.f32.mrb[0].mxu0
    %614 = vdwg.mxu0
    %615 = vmatprep.subr.bf16.mxu0 %v481
    %616 = vmatpush1.bf16.msra.mxu0 %v480
    %617 = vmatprep.subr.bf16.mxu0 %v484
    %618 = vmatpush1.bf16.msra.mxu0 %v483
    %619 = vmatprep.subr.bf16.mxu0 %v487
    %620 = vmatpush1.bf16.msra.mxu0 %v486
    %621 = vmatprep.subr.bf16.mxu0 %v490
    %622 = vmatpush1.bf16.msra.mxu0 %v489
    %623 = vmatprep.subr.bf16.mxu0 %v493
    %624 = vmatpush1.bf16.msra.mxu0 %v492
    %625 = vmatprep.subr.bf16.mxu0 %v496
    %626 = vmatpush1.bf16.msra.mxu0 %v495
    %627 = vmatprep.subr.bf16.mxu0 %v499
    %628 = vmatpush1.bf16.msra.mxu0 %v498
    %629 = vmatprep.subr.bf16.mxu0 0
    %630 = vmatpush1.bf16.msra.mxu0 0
    %631 = vmatprep.subr.bf16.mxu0 0
    %632 = vmatpush1.bf16.msra.mxu0 0
    %633 = vmatprep.subr.bf16.mxu0 0
    %634 = vmatpush1.bf16.msra.mxu0 0
    %635 = vmatprep.subr.bf16.mxu0 0
    %636 = vmatpush1.bf16.msra.mxu0 0
    %637 = vmatprep.subr.bf16.mxu0 0
    %638 = vmatpush1.bf16.msra.mxu0 0
    %639 = vmatprep.subr.bf16.mxu0 0
    %640 = vmatpush1.bf16.msra.mxu0 0
    %641 = vmatprep.subr.bf16.mxu0 0
    %642 = vmatpush1.bf16.msra.mxu0 0
    %643 = vmatprep.subr.bf16.mxu0 0
    %644 = vmatpush1.bf16.msra.mxu0 0
    %645 = vmatprep.subr.bf16.mxu0 0
    %646 = vmatpush1.bf16.msra.mxu0 0
    %647 = vmatprep.mubr.bf16.mxu0 0
    %648 = vmatmul.mubr.bf16.gmra.mrb[0].mxu0 %v572
    %v649 = vpop.f32.mrb[0].mxu0
    %v650 = vadd.f32 %v609, %v649
    %v651 = vpop.f32.mrb[0].mxu0
    %v652 = vadd.f32 %v611, %v651
    %v653 = vpop.f32.mrb[0].mxu0
    %v654 = vpop.f32.mrb[0].mxu0
    %655 = vdwg.mxu0
    %656 = vmatprep.subr.bf16.mxu0 0
    %657 = vmatpush1.bf16.msra.mxu0 %v434
    %658 = vmatprep.subr.bf16.mxu0 0
    %659 = vmatpush1.bf16.msra.mxu0 %v437
    %660 = vmatprep.subr.bf16.mxu0 0
    %661 = vmatpush1.bf16.msra.mxu0 %v440
    %662 = vmatprep.subr.bf16.mxu0 0
    %663 = vmatpush1.bf16.msra.mxu0 %v443
    %664 = vmatprep.subr.bf16.mxu0 0
    %665 = vmatpush1.bf16.msra.mxu0 %v446
    %666 = vmatprep.subr.bf16.mxu0 0
    %667 = vmatpush1.bf16.msra.mxu0 %v449
    %668 = vmatprep.subr.bf16.mxu0 0
    %669 = vmatpush1.bf16.msra.mxu0 %v452
    %670 = vmatprep.subr.bf16.mxu0 0
    %671 = vmatpush1.bf16.msra.mxu0 %v455
    %672 = vmatprep.subr.bf16.mxu0 0
    %673 = vmatpush1.bf16.msra.mxu0 %v458
    %674 = vmatprep.subr.bf16.mxu0 0
    %675 = vmatpush1.bf16.msra.mxu0 %v461
    %676 = vmatprep.subr.bf16.mxu0 0
    %677 = vmatpush1.bf16.msra.mxu0 %v464
    %678 = vmatprep.subr.bf16.mxu0 0
    %679 = vmatpush1.bf16.msra.mxu0 %v467
    %680 = vmatprep.subr.bf16.mxu0 0
    %681 = vmatpush1.bf16.msra.mxu0 %v470
    %682 = vmatprep.subr.bf16.mxu0 0
    %683 = vmatpush1.bf16.msra.mxu0 %v473
    %684 = vmatprep.subr.bf16.mxu0 0
    %685 = vmatpush1.bf16.msra.mxu0 %v476
    %686 = vmatprep.subr.bf16.mxu0 0
    %687 = vmatpush1.bf16.msra.mxu0 %v479
    %688 = vmatprep.mubr.bf16.mxu0 %v108
    %689 = vmatmul.mubr.bf16.gmra.mrb[0].mxu0 %v107
    %v690 = vpop.f32.mrb[0].mxu0
    %v691 = vadd.f32 0.0, %v690
    %v692 = vpop.f32.mrb[0].mxu0
    %v693 = vpop.f32.mrb[0].mxu0
    %v694 = vpop.f32.mrb[0].mxu0
    %695 = vdwg.mxu0
    %696 = vmatprep.subr.bf16.mxu0 0
    %697 = vmatpush1.bf16.msra.mxu0 %v482
    %698 = vmatprep.subr.bf16.mxu0 0
    %699 = vmatpush1.bf16.msra.mxu0 %v485
    %700 = vmatprep.subr.bf16.mxu0 0
    %701 = vmatpush1.bf16.msra.mxu0 %v488
    %702 = vmatprep.subr.bf16.mxu0 0
    %703 = vmatpush1.bf16.msra.mxu0 %v491
    %704 = vmatprep.subr.bf16.mxu0 0
    %705 = vmatpush1.bf16.msra.mxu0 %v494
    %706 = vmatprep.subr.bf16.mxu0 0
    %707 = vmatpush1.bf16.msra.mxu0 %v497
    %708 = vmatprep.subr.bf16.mxu0 0
    %709 = vmatpush1.bf16.msra.mxu0 %v500
    %710 = vmatprep.subr.bf16.mxu0 0
    %711 = vmatpush1.bf16.msra.mxu0 0
    %712 = vmatprep.subr.bf16.mxu0 0
    %713 = vmatpush1.bf16.msra.mxu0 0
    %714 = vmatprep.subr.bf16.mxu0 0
    %715 = vmatpush1.bf16.msra.mxu0 0
    %716 = vmatprep.subr.bf16.mxu0 0
    %717 = vmatpush1.bf16.msra.mxu0 0
    %718 = vmatprep.subr.bf16.mxu0 0
    %719 = vmatpush1.bf16.msra.mxu0 0
    %720 = vmatprep.subr.bf16.mxu0 0
    %721 = vmatpush1.bf16.msra.mxu0 0
    %722 = vmatprep.subr.bf16.mxu0 0
    %723 = vmatpush1.bf16.msra.mxu0 0
    %724 = vmatprep.subr.bf16.mxu0 0
    %725 = vmatpush1.bf16.msra.mxu0 0
    %726 = vmatprep.subr.bf16.mxu0 0
    %727 = vmatpush1.bf16.msra.mxu0 0
    %728 = vmatprep.mubr.bf16.mxu0 0
    %729 = vmatmul.mubr.bf16.gmra.mrb[0].mxu0 %v572
    %v730 = vpop.f32.mrb[0].mxu0
    %v731 = vadd.f32 %v691, %v730
    %v732 = vpop.f32.mrb[0].mxu0
    %v733 = vpop.f32.mrb[0].mxu0
    %v734 = vpop.f32.mrb[0].mxu0
    %735 = vdwg.mxu0
    %v736 = vpack.c.bf16 %v650, %v650
    %v737 = vpack.c.bf16 %v652, %v652
    %v738 = vpack.c.bf16 %v731, %v731
    %v739 = vld [vmem:[%s2] sm:$0x7]
    %v741 = vlaneseq
    %v742 = vshrl.u32 %v741, 7
    %v743 = vsub.s32 0, %v742
    %v744 = vrot.slane %v739, %v743
    %v745 = vlaneseq
    %v746 = vshrl.u32 %v745, 7
    %v747 = vsub.s32 1, %v746
    %v748 = vrot.slane %v739, %v747
    %v749 = vlaneseq
    %v750 = vshrl.u32 %v749, 7
    %v751 = vsub.s32 2, %v750
    %v752 = vrot.slane %v739, %v751
    %v756 = vpack.c.bf16 %v744, %v744
    %v757 = vpack.c.bf16 %v748, %v748
    %v758 = vpack.c.bf16 %v752, %v752
    %v760 = vpack.i.b16 %v756, %v756
    %v762 = vlaneseq
    %v763 = vshrl.u32 %v762, 7
    %v764 = vsub.s32 0, %v763
    %v765 = vrot.slane %v760, %v764
    %v767 = vpack.i.b16 %v757, %v757
    %v769 = vlaneseq
    %v770 = vshrl.u32 %v769, 7
    %v771 = vsub.s32 0, %v770
    %v772 = vrot.slane %v767, %v771
    %v774 = vpack.i.b16 %v758, %v758
    %v776 = vlaneseq
    %v777 = vshrl.u32 %v776, 7
    %v778 = vsub.s32 0, %v777
    %v779 = vrot.slane %v774, %v778
    %v780 = vadd.bf16 %v736, %v765
    %v781 = vadd.bf16 %v737, %v772
    %v782 = vadd.bf16 %v738, %v779
    %v783 = vmul.bf16 %v780, 1056980736
    %v784 = vmul.bf16 %v781, 1056980736
    %v785 = vmul.bf16 %v782, 1056980736
    %v786 = vtanh.bf16.pop %v783
    %v787 = vtanh.bf16.pop %v784
    %v788 = vtanh.bf16.pop %v785
    %v789 = vadd.bf16 %v786, 1065369472
    %v790 = vadd.bf16 %v787, 1065369472
    %v791 = vadd.bf16 %v788, 1065369472
    %v792 = vmul.bf16 %v789, 1056980736
    %v793 = vmul.bf16 %v790, 1056980736
    %v794 = vmul.bf16 %v791, 1056980736
    %v795 = vmul.bf16 %v780, %v792
    %v796 = vmul.bf16 %v781, %v793
    %v797 = vmul.bf16 %v782, %v794
    %v798 = vld [vmem:[#allocation7] sm:$0xff]
    %v799 = vld [vmem:[#allocation7 + $0x8] sm:$0xf]
    %v800 = vld [vmem:[#allocation7 + $0xc] sm:$0xff]
    %v801 = vld [vmem:[#allocation7 + $0x14] sm:$0xf]
    %v802 = vld [vmem:[#allocation7 + $0x18] sm:$0xff]
    %v803 = vld [vmem:[#allocation7 + $0x20] sm:$0xf]
    %v804 = vld [vmem:[#allocation7 + $0x24] sm:$0xff]
    %v805 = vld [vmem:[#allocation7 + $0x2c] sm:$0xf]
    %v806 = vld [vmem:[#allocation7 + $0x30] sm:$0xff]
    %v807 = vld [vmem:[#allocation7 + $0x38] sm:$0xf]
    %v808 = vld [vmem:[#allocation7 + $0x3c] sm:$0xff]
    %v809 = vld [vmem:[#allocation7 + $0x44] sm:$0xf]
    %v810 = vld [vmem:[#allocation7 + $0x48] sm:$0xff]
    %v811 = vld [vmem:[#allocation7 + $0x50] sm:$0xf]
    %v812 = vld [vmem:[#allocation7 + $0x54] sm:$0xff]
    %v813 = vld [vmem:[#allocation7 + $0x5c] sm:$0xf]
    %v814 = vld [vmem:[#allocation7 + $0x60] sm:$0xff]
    %v815 = vld [vmem:[#allocation7 + $0x68] sm:$0xf]
    %v816 = vld [vmem:[#allocation7 + $0x6c] sm:$0xff]
    %v817 = vld [vmem:[#allocation7 + $0x74] sm:$0xf]
    %v818 = vld [vmem:[#allocation7 + $0x78] sm:$0xff]
    %v819 = vld [vmem:[#allocation7 + $0x80] sm:$0xf]
    %v820 = vld [vmem:[#allocation7 + $0x84] sm:$0xff]
    %v821 = vld [vmem:[#allocation7 + $0x8c] sm:$0xf]
    %v822 = vld [vmem:[#allocation7 + $0x90] sm:$0xff]
    %v823 = vld [vmem:[#allocation7 + $0x98] sm:$0xf]
    %v824 = vld [vmem:[#allocation7 + $0x9c] sm:$0xff]
    %v825 = vld [vmem:[#allocation7 + $0xa4] sm:$0xf]
    %v826 = vld [vmem:[#allocation7 + $0xa8] sm:$0xff]
    %v827 = vld [vmem:[#allocation7 + $0xb0] sm:$0xf]
    %v828 = vld [vmem:[#allocation7 + $0xb4] sm:$0xff]
    %v829 = vld [vmem:[#allocation7 + $0xbc] sm:$0xf]
    %v830 = vld [vmem:[#allocation7 + $0xc0] sm:$0xff]
    %v831 = vld [vmem:[#allocation7 + $0xc8] sm:$0xf]
    %v832 = vld [vmem:[#allocation7 + $0xcc] sm:$0xff]
    %v833 = vld [vmem:[#allocation7 + $0xd4] sm:$0xf]
    %v834 = vld [vmem:[#allocation7 + $0xd8] sm:$0xff]
    %v835 = vld [vmem:[#allocation7 + $0xe0] sm:$0xf]
    %v836 = vld [vmem:[#allocation7 + $0xe4] sm:$0xff]
    %v837 = vld [vmem:[#allocation7 + $0xec] sm:$0xf]
    %v838 = vld [vmem:[#allocation7 + $0xf0] sm:$0xff]
    %v839 = vld [vmem:[#allocation7 + $0xf8] sm:$0xf]
    %v840 = vld [vmem:[#allocation7 + $0xfc] sm:$0xff]
    %v841 = vld [vmem:[#allocation7 + $0x104] sm:$0xf]
    %v842 = vld [vmem:[#allocation7 + $0x108] sm:$0xff]
    %v843 = vld [vmem:[#allocation7 + $0x110] sm:$0xf]
    %v844 = vld [vmem:[#allocation7 + $0x114] sm:$0xff]
    %v845 = vld [vmem:[#allocation7 + $0x11c] sm:$0xf]
    %v846 = vld [vmem:[#allocation7 + $0x120] sm:$0xff]
    %v847 = vld [vmem:[#allocation7 + $0x128] sm:$0xf]
    %v848 = vld [vmem:[#allocation7 + $0x12c] sm:$0xff]
    %v849 = vld [vmem:[#allocation7 + $0x134] sm:$0xf]
    %v850 = vld [vmem:[#allocation7 + $0x138] sm:$0xff]
    %v851 = vld [vmem:[#allocation7 + $0x140] sm:$0xf]
    %v852 = vld [vmem:[#allocation7 + $0x144] sm:$0xff]
    %v853 = vld [vmem:[#allocation7 + $0x14c] sm:$0xf]
    %v854 = vld [vmem:[#allocation7 + $0x150] sm:$0xff]
    %v855 = vld [vmem:[#allocation7 + $0x158] sm:$0xf]
    %v856 = vld [vmem:[#allocation7 + $0x15c] sm:$0xff]
    %v857 = vld [vmem:[#allocation7 + $0x164] sm:$0xf]
    %v858 = vld [vmem:[#allocation7 + $0x168] sm:$0xff]
    %v859 = vld [vmem:[#allocation7 + $0x170] sm:$0xf]
    %v860 = vld [vmem:[#allocation7 + $0x174] sm:$0xff]
    %v861 = vld [vmem:[#allocation7 + $0x17c] sm:$0xf]
    %v862 = vld [vmem:[#allocation7 + $0x180] sm:$0xff]
    %v863 = vld [vmem:[#allocation7 + $0x188] sm:$0xf]
    %v864 = vld [vmem:[#allocation7 + $0x18c] sm:$0xff]
    %v865 = vld [vmem:[#allocation7 + $0x194] sm:$0xf]
    %v866 = vld [vmem:[#allocation7 + $0x198] sm:$0xff]
    %v867 = vld [vmem:[#allocation7 + $0x1a0] sm:$0xf]
    %v868 = vld [vmem:[#allocation7 + $0x1a4] sm:$0xff]
    %v869 = vld [vmem:[#allocation7 + $0x1ac] sm:$0xf]
    %v870 = vld [vmem:[#allocation7 + $0x1b0] sm:$0xff]
    %v871 = vld [vmem:[#allocation7 + $0x1b8] sm:$0xf]
    %v872 = vld [vmem:[#allocation7 + $0x1bc] sm:$0xff]
    %v873 = vld [vmem:[#allocation7 + $0x1c4] sm:$0xf]
    %v874 = vld [vmem:[#allocation7 + $0x1c8] sm:$0xff]
    %v875 = vld [vmem:[#allocation7 + $0x1d0] sm:$0xf]
    %v876 = vld [vmem:[#allocation7 + $0x1d4] sm:$0xff]
    %v877 = vld [vmem:[#allocation7 + $0x1dc] sm:$0xf]
    %v878 = vld [vmem:[#allocation7 + $0x1e0] sm:$0xff]
    %v879 = vld [vmem:[#allocation7 + $0x1e8] sm:$0xf]
    %v880 = vld [vmem:[#allocation7 + $0x1ec] sm:$0xff]
    %v881 = vld [vmem:[#allocation7 + $0x1f4] sm:$0xf]
    %v882 = vld [vmem:[#allocation7 + $0x1f8] sm:$0xff]
    %v883 = vld [vmem:[#allocation7 + $0x200] sm:$0xf]
    %v884 = vld [vmem:[#allocation7 + $0x204] sm:$0xff]
    %v885 = vld [vmem:[#allocation7 + $0x20c] sm:$0xf]
    %v886 = vld [vmem:[#allocation7 + $0x210] sm:$0xff]
    %v887 = vld [vmem:[#allocation7 + $0x218] sm:$0xf]
    %v888 = vld [vmem:[#allocation7 + $0x21c] sm:$0xff]
    %v889 = vld [vmem:[#allocation7 + $0x224] sm:$0xf]
    %v890 = vld [vmem:[#allocation7 + $0x228] sm:$0xff]
    %v891 = vld [vmem:[#allocation7 + $0x230] sm:$0xf]
    %v892 = vld [vmem:[#allocation7 + $0x234] sm:$0xff]
    %v893 = vld [vmem:[#allocation7 + $0x23c] sm:$0xf]
    %v990 = vunpack.c.l.b16 %v798
    %v991 = vunpack.c.h.b16 %v798
    %v992 = vunpack.c.l.b16 %v799
    %v993 = vunpack.c.l.b16 %v800
    %v994 = vunpack.c.h.b16 %v800
    %v995 = vunpack.c.l.b16 %v801
    %v996 = vunpack.c.l.b16 %v802
    %v997 = vunpack.c.h.b16 %v802
    %v998 = vunpack.c.l.b16 %v803
    %v999 = vunpack.c.l.b16 %v804
    %v1000 = vunpack.c.h.b16 %v804
    %v1001 = vunpack.c.l.b16 %v805
    %v1002 = vunpack.c.l.b16 %v806
    %v1003 = vunpack.c.h.b16 %v806
    %v1004 = vunpack.c.l.b16 %v807
    %v1005 = vunpack.c.l.b16 %v808
    %v1006 = vunpack.c.h.b16 %v808
    %v1007 = vunpack.c.l.b16 %v809
    %v1008 = vunpack.c.l.b16 %v810
    %v1009 = vunpack.c.h.b16 %v810
    %v1010 = vunpack.c.l.b16 %v811
    %v1011 = vunpack.c.l.b16 %v812
    %v1012 = vunpack.c.h.b16 %v812
    %v1013 = vunpack.c.l.b16 %v813
    %v1014 = vunpack.c.l.b16 %v814
    %v1015 = vunpack.c.h.b16 %v814
    %v1016 = vunpack.c.l.b16 %v815
    %v1017 = vunpack.c.l.b16 %v816
    %v1018 = vunpack.c.h.b16 %v816
    %v1019 = vunpack.c.l.b16 %v817
    %v1020 = vunpack.c.l.b16 %v818
    %v1021 = vunpack.c.h.b16 %v818
    %v1022 = vunpack.c.l.b16 %v819
    %v1023 = vunpack.c.l.b16 %v820
    %v1024 = vunpack.c.h.b16 %v820
    %v1025 = vunpack.c.l.b16 %v821
    %v1026 = vunpack.c.l.b16 %v822
    %v1027 = vunpack.c.h.b16 %v822
    %v1028 = vunpack.c.l.b16 %v823
    %v1029 = vunpack.c.l.b16 %v824
    %v1030 = vunpack.c.h.b16 %v824
    %v1031 = vunpack.c.l.b16 %v825
    %v1032 = vunpack.c.l.b16 %v826
    %v1033 = vunpack.c.h.b16 %v826
    %v1034 = vunpack.c.l.b16 %v827
    %v1035 = vunpack.c.l.b16 %v828
    %v1036 = vunpack.c.h.b16 %v828
    %v1037 = vunpack.c.l.b16 %v829
    %v1038 = vunpack.c.l.b16 %v830
    %v1039 = vunpack.c.h.b16 %v830
    %v1040 = vunpack.c.l.b16 %v831
    %v1041 = vunpack.c.l.b16 %v832
    %v1042 = vunpack.c.h.b16 %v832
    %v1043 = vunpack.c.l.b16 %v833
    %v1044 = vunpack.c.l.b16 %v834
    %v1045 = vunpack.c.h.b16 %v834
    %v1046 = vunpack.c.l.b16 %v835
    %v1047 = vunpack.c.l.b16 %v836
    %v1048 = vunpack.c.h.b16 %v836
    %v1049 = vunpack.c.l.b16 %v837
    %v1050 = vunpack.c.l.b16 %v838
    %v1051 = vunpack.c.h.b16 %v838
    %v1052 = vunpack.c.l.b16 %v839
    %v1053 = vunpack.c.l.b16 %v840
    %v1054 = vunpack.c.h.b16 %v840
    %v1055 = vunpack.c.l.b16 %v841
    %v1056 = vunpack.c.l.b16 %v842
    %v1057 = vunpack.c.h.b16 %v842
    %v1058 = vunpack.c.l.b16 %v843
    %v1059 = vunpack.c.l.b16 %v844
    %v1060 = vunpack.c.h.b16 %v844
    %v1061 = vunpack.c.l.b16 %v845
    %v1062 = vunpack.c.l.b16 %v846
    %v1063 = vunpack.c.h.b16 %v846
    %v1064 = vunpack.c.l.b16 %v847
    %v1065 = vunpack.c.l.b16 %v848
    %v1066 = vunpack.c.h.b16 %v848
    %v1067 = vunpack.c.l.b16 %v849
    %v1068 = vunpack.c.l.b16 %v850
    %v1069 = vunpack.c.h.b16 %v850
    %v1070 = vunpack.c.l.b16 %v851
    %v1071 = vunpack.c.l.b16 %v852
    %v1072 = vunpack.c.h.b16 %v852
    %v1073 = vunpack.c.l.b16 %v853
    %v1074 = vunpack.c.l.b16 %v854
    %v1075 = vunpack.c.h.b16 %v854
    %v1076 = vunpack.c.l.b16 %v855
    %v1077 = vunpack.c.l.b16 %v856
    %v1078 = vunpack.c.h.b16 %v856
    %v1079 = vunpack.c.l.b16 %v857
    %v1080 = vunpack.c.l.b16 %v858
    %v1081 = vunpack.c.h.b16 %v858
    %v1082 = vunpack.c.l.b16 %v859
    %v1083 = vunpack.c.l.b16 %v860
    %v1084 = vunpack.c.h.b16 %v860
    %v1085 = vunpack.c.l.b16 %v861
    %v1086 = vunpack.c.l.b16 %v862
    %v1087 = vunpack.c.h.b16 %v862
    %v1088 = vunpack.c.l.b16 %v863
    %v1089 = vunpack.c.l.b16 %v864
    %v1090 = vunpack.c.h.b16 %v864
    %v1091 = vunpack.c.l.b16 %v865
    %v1092 = vunpack.c.l.b16 %v866
    %v1093 = vunpack.c.h.b16 %v866
    %v1094 = vunpack.c.l.b16 %v867
    %v1095 = vunpack.c.l.b16 %v868
    %v1096 = vunpack.c.h.b16 %v868
    %v1097 = vunpack.c.l.b16 %v869
    %v1098 = vunpack.c.l.b16 %v870
    %v1099 = vunpack.c.h.b16 %v870
    %v1100 = vunpack.c.l.b16 %v871
    %v1101 = vunpack.c.l.b16 %v872
    %v1102 = vunpack.c.h.b16 %v872
    %v1103 = vunpack.c.l.b16 %v873
    %v1104 = vunpack.c.l.b16 %v874
    %v1105 = vunpack.c.h.b16 %v874
    %v1106 = vunpack.c.l.b16 %v875
    %v1107 = vunpack.c.l.b16 %v876
    %v1108 = vunpack.c.h.b16 %v876
    %v1109 = vunpack.c.l.b16 %v877
    %v1110 = vunpack.c.l.b16 %v878
    %v1111 = vunpack.c.h.b16 %v878
    %v1112 = vunpack.c.l.b16 %v879
    %v1113 = vunpack.c.l.b16 %v880
    %v1114 = vunpack.c.h.b16 %v880
    %v1115 = vunpack.c.l.b16 %v881
    %v1116 = vunpack.c.l.b16 %v882
    %v1117 = vunpack.c.h.b16 %v882
    %v1118 = vunpack.c.l.b16 %v883
    %v1119 = vunpack.c.l.b16 %v884
    %v1120 = vunpack.c.h.b16 %v884
    %v1121 = vunpack.c.l.b16 %v885
    %v1122 = vunpack.c.l.b16 %v886
    %v1123 = vunpack.c.h.b16 %v886
    %v1124 = vunpack.c.l.b16 %v887
    %v1125 = vunpack.c.l.b16 %v888
    %v1126 = vunpack.c.h.b16 %v888
    %v1127 = vunpack.c.l.b16 %v889
    %v1128 = vunpack.c.l.b16 %v890
    %v1129 = vunpack.c.h.b16 %v890
    %v1130 = vunpack.c.l.b16 %v891
    %v1131 = vunpack.c.l.b16 %v892
    %v1132 = vunpack.c.h.b16 %v892
    %v1133 = vunpack.c.l.b16 %v893
    %v1134 = vpack.c.b16 %v993, %v990
    %v1135 = vpack.c.b16 %v994, %v991
    %v1136 = vpack.c.b16 %v995, %v992
    %v1137 = vpack.c.b16 %v999, %v996
    %v1138 = vpack.c.b16 %v1000, %v997
    %v1139 = vpack.c.b16 %v1001, %v998
    %v1140 = vpack.c.b16 %v1005, %v1002
    %v1141 = vpack.c.b16 %v1006, %v1003
    %v1142 = vpack.c.b16 %v1007, %v1004
    %v1143 = vpack.c.b16 %v1011, %v1008
    %v1144 = vpack.c.b16 %v1012, %v1009
    %v1145 = vpack.c.b16 %v1013, %v1010
    %v1146 = vpack.c.b16 %v1017, %v1014
    %v1147 = vpack.c.b16 %v1018, %v1015
    %v1148 = vpack.c.b16 %v1019, %v1016
    %v1149 = vpack.c.b16 %v1023, %v1020
    %v1150 = vpack.c.b16 %v1024, %v1021
    %v1151 = vpack.c.b16 %v1025, %v1022
    %v1152 = vpack.c.b16 %v1029, %v1026
    %v1153 = vpack.c.b16 %v1030, %v1027
    %v1154 = vpack.c.b16 %v1031, %v1028
    %v1155 = vpack.c.b16 %v1035, %v1032
    %v1156 = vpack.c.b16 %v1036, %v1033
    %v1157 = vpack.c.b16 %v1037, %v1034
    %v1158 = vpack.c.b16 %v1041, %v1038
    %v1159 = vpack.c.b16 %v1042, %v1039
    %v1160 = vpack.c.b16 %v1043, %v1040
    %v1161 = vpack.c.b16 %v1047, %v1044
    %v1162 = vpack.c.b16 %v1048, %v1045
    %v1163 = vpack.c.b16 %v1049, %v1046
    %v1164 = vpack.c.b16 %v1053, %v1050
    %v1165 = vpack.c.b16 %v1054, %v1051
    %v1166 = vpack.c.b16 %v1055, %v1052
    %v1167 = vpack.c.b16 %v1059, %v1056
    %v1168 = vpack.c.b16 %v1060, %v1057
    %v1169 = vpack.c.b16 %v1061, %v1058
    %v1170 = vpack.c.b16 %v1065, %v1062
    %v1171 = vpack.c.b16 %v1066, %v1063
    %v1172 = vpack.c.b16 %v1067, %v1064
    %v1173 = vpack.c.b16 %v1071, %v1068
    %v1174 = vpack.c.b16 %v1072, %v1069
    %v1175 = vpack.c.b16 %v1073, %v1070
    %v1176 = vpack.c.b16 %v1077, %v1074
    %v1177 = vpack.c.b16 %v1078, %v1075
    %v1178 = vpack.c.b16 %v1079, %v1076
    %v1179 = vpack.c.b16 %v1083, %v1080
    %v1180 = vpack.c.b16 %v1084, %v1081
    %v1181 = vpack.c.b16 %v1085, %v1082
    %v1182 = vpack.c.b16 %v1089, %v1086
    %v1183 = vpack.c.b16 %v1090, %v1087
    %v1184 = vpack.c.b16 %v1091, %v1088
    %v1185 = vpack.c.b16 %v1095, %v1092
    %v1186 = vpack.c.b16 %v1096, %v1093
    %v1187 = vpack.c.b16 %v1097, %v1094
    %v1188 = vpack.c.b16 %v1101, %v1098
    %v1189 = vpack.c.b16 %v1102, %v1099
    %v1190 = vpack.c.b16 %v1103, %v1100
    %v1191 = vpack.c.b16 %v1107, %v1104
    %v1192 = vpack.c.b16 %v1108, %v1105
    %v1193 = vpack.c.b16 %v1109, %v1106
    %v1194 = vpack.c.b16 %v1113, %v1110
    %v1195 = vpack.c.b16 %v1114, %v1111
    %v1196 = vpack.c.b16 %v1115, %v1112
    %v1197 = vpack.c.b16 %v1119, %v1116
    %v1198 = vpack.c.b16 %v1120, %v1117
    %v1199 = vpack.c.b16 %v1121, %v1118
    %v1200 = vpack.c.b16 %v1125, %v1122
    %v1201 = vpack.c.b16 %v1126, %v1123
    %v1202 = vpack.c.b16 %v1127, %v1124
    %v1203 = vpack.c.b16 %v1131, %v1128
    %v1204 = vpack.c.b16 %v1132, %v1129
    %v1205 = vpack.c.b16 %v1133, %v1130
    %1278 = vmatprep.subr.bf16.mxu0 %v1135
    %1279 = vmatpush1.bf16.msra.mxu0 %v1134
    %1280 = vmatprep.subr.bf16.mxu0 %v1138
    %1281 = vmatpush1.bf16.msra.mxu0 %v1137
    %1282 = vmatprep.subr.bf16.mxu0 %v1141
    %1283 = vmatpush1.bf16.msra.mxu0 %v1140
    %1284 = vmatprep.subr.bf16.mxu0 %v1144
    %1285 = vmatpush1.bf16.msra.mxu0 %v1143
    %1286 = vmatprep.subr.bf16.mxu0 %v1147
    %1287 = vmatpush1.bf16.msra.mxu0 %v1146
    %1288 = vmatprep.subr.bf16.mxu0 %v1150
    %1289 = vmatpush1.bf16.msra.mxu0 %v1149
    %1290 = vmatprep.subr.bf16.mxu0 %v1153
    %1291 = vmatpush1.bf16.msra.mxu0 %v1152
    %1292 = vmatprep.subr.bf16.mxu0 %v1156
    %1293 = vmatpush1.bf16.msra.mxu0 %v1155
    %1294 = vmatprep.subr.bf16.mxu0 %v1159
    %1295 = vmatpush1.bf16.msra.mxu0 %v1158
    %1296 = vmatprep.subr.bf16.mxu0 %v1162
    %1297 = vmatpush1.bf16.msra.mxu0 %v1161
    %1298 = vmatprep.subr.bf16.mxu0 %v1165
    %1299 = vmatpush1.bf16.msra.mxu0 %v1164
    %1300 = vmatprep.subr.bf16.mxu0 %v1168
    %1301 = vmatpush1.bf16.msra.mxu0 %v1167
    %1302 = vmatprep.subr.bf16.mxu0 %v1171
    %1303 = vmatpush1.bf16.msra.mxu0 %v1170
    %1304 = vmatprep.subr.bf16.mxu0 %v1174
    %1305 = vmatpush1.bf16.msra.mxu0 %v1173
    %1306 = vmatprep.subr.bf16.mxu0 %v1177
    %1307 = vmatpush1.bf16.msra.mxu0 %v1176
    %1308 = vmatprep.subr.bf16.mxu0 %v1180
    %1309 = vmatpush1.bf16.msra.mxu0 %v1179
    %1310 = vmatprep.mubr.bf16.mxu0 %v796
    %1311 = vmatmul.mubr.bf16.gmra.mrb[0].mxu0 %v795
    %v1312 = vpop.f32.mrb[0].mxu0
    %v1313 = vadd.f32 0.0, %v1312
    %v1314 = vpop.f32.mrb[0].mxu0
    %v1315 = vadd.f32 0.0, %v1314
    %v1316 = vpop.f32.mrb[0].mxu0
    %v1317 = vpop.f32.mrb[0].mxu0
    %1318 = vdwg.mxu0
    %1319 = vmatprep.subr.bf16.mxu0 %v1183
    %1320 = vmatpush1.bf16.msra.mxu0 %v1182
    %1321 = vmatprep.subr.bf16.mxu0 %v1186
    %1322 = vmatpush1.bf16.msra.mxu0 %v1185
    %1323 = vmatprep.subr.bf16.mxu0 %v1189
    %1324 = vmatpush1.bf16.msra.mxu0 %v1188
    %1325 = vmatprep.subr.bf16.mxu0 %v1192
    %1326 = vmatpush1.bf16.msra.mxu0 %v1191
    %1327 = vmatprep.subr.bf16.mxu0 %v1195
    %1328 = vmatpush1.bf16.msra.mxu0 %v1194
    %1329 = vmatprep.subr.bf16.mxu0 %v1198
    %1330 = vmatpush1.bf16.msra.mxu0 %v1197
    %1331 = vmatprep.subr.bf16.mxu0 %v1201
    %1332 = vmatpush1.bf16.msra.mxu0 %v1200
    %1333 = vmatprep.subr.bf16.mxu0 %v1204
    %1334 = vmatpush1.bf16.msra.mxu0 %v1203
    %1335 = vmatprep.subr.bf16.mxu0 0
    %1336 = vmatpush1.bf16.msra.mxu0 0
    %1337 = vmatprep.subr.bf16.mxu0 0
    %1338 = vmatpush1.bf16.msra.mxu0 0
    %1339 = vmatprep.subr.bf16.mxu0 0
    %1340 = vmatpush1.bf16.msra.mxu0 0
    %1341 = vmatprep.subr.bf16.mxu0 0
    %1342 = vmatpush1.bf16.msra.mxu0 0
    %1343 = vmatprep.subr.bf16.mxu0 0
    %1344 = vmatpush1.bf16.msra.mxu0 0
    %1345 = vmatprep.subr.bf16.mxu0 0
    %1346 = vmatpush1.bf16.msra.mxu0 0
    %1347 = vmatprep.subr.bf16.mxu0 0
    %1348 = vmatpush1.bf16.msra.mxu0 0
    %1349 = vmatprep.subr.bf16.mxu0 0
    %1350 = vmatpush1.bf16.msra.mxu0 0
    %1351 = vmatprep.mubr.bf16.mxu0 0
    %1352 = vmatmul.mubr.bf16.gmra.mrb[0].mxu0 %v797
    %v1353 = vpop.f32.mrb[0].mxu0
    %v1354 = vadd.f32 %v1313, %v1353
    %v1355 = vpop.f32.mrb[0].mxu0
    %v1356 = vadd.f32 %v1315, %v1355
    %v1357 = vpop.f32.mrb[0].mxu0
    %v1358 = vpop.f32.mrb[0].mxu0
    %1359 = vdwg.mxu0
    %1360 = vmatprep.subr.bf16.mxu0 0
    %1361 = vmatpush1.bf16.msra.mxu0 %v1136
    %1362 = vmatprep.subr.bf16.mxu0 0
    %1363 = vmatpush1.bf16.msra.mxu0 %v1139
    %1364 = vmatprep.subr.bf16.mxu0 0
    %1365 = vmatpush1.bf16.msra.mxu0 %v1142
    %1366 = vmatprep.subr.bf16.mxu0 0
    %1367 = vmatpush1.bf16.msra.mxu0 %v1145
    %1368 = vmatprep.subr.bf16.mxu0 0
    %1369 = vmatpush1.bf16.msra.mxu0 %v1148
    %1370 = vmatprep.subr.bf16.mxu0 0
    %1371 = vmatpush1.bf16.msra.mxu0 %v1151
    %1372 = vmatprep.subr.bf16.mxu0 0
    %1373 = vmatpush1.bf16.msra.mxu0 %v1154
    %1374 = vmatprep.subr.bf16.mxu0 0
    %1375 = vmatpush1.bf16.msra.mxu0 %v1157
    %1376 = vmatprep.subr.bf16.mxu0 0
    %1377 = vmatpush1.bf16.msra.mxu0 %v1160
    %1378 = vmatprep.subr.bf16.mxu0 0
    %1379 = vmatpush1.bf16.msra.mxu0 %v1163
    %1380 = vmatprep.subr.bf16.mxu0 0
    %1381 = vmatpush1.bf16.msra.mxu0 %v1166
    %1382 = vmatprep.subr.bf16.mxu0 0
    %1383 = vmatpush1.bf16.msra.mxu0 %v1169
    %1384 = vmatprep.subr.bf16.mxu0 0
    %1385 = vmatpush1.bf16.msra.mxu0 %v1172
    %1386 = vmatprep.subr.bf16.mxu0 0
    %1387 = vmatpush1.bf16.msra.mxu0 %v1175
    %1388 = vmatprep.subr.bf16.mxu0 0
    %1389 = vmatpush1.bf16.msra.mxu0 %v1178
    %1390 = vmatprep.subr.bf16.mxu0 0
    %1391 = vmatpush1.bf16.msra.mxu0 %v1181
    %1392 = vmatprep.mubr.bf16.mxu0 %v796
    %1393 = vmatmul.mubr.bf16.gmra.mrb[0].mxu0 %v795
    %v1394 = vpop.f32.mrb[0].mxu0
    %v1395 = vadd.f32 0.0, %v1394
    %v1396 = vpop.f32.mrb[0].mxu0
    %v1397 = vpop.f32.mrb[0].mxu0
    %v1398 = vpop.f32.mrb[0].mxu0
    %1399 = vdwg.mxu0
    %1400 = vmatprep.subr.bf16.mxu0 0
    %1401 = vmatpush1.bf16.msra.mxu0 %v1184
    %1402 = vmatprep.subr.bf16.mxu0 0
    %1403 = vmatpush1.bf16.msra.mxu0 %v1187
    %1404 = vmatprep.subr.bf16.mxu0 0
    %1405 = vmatpush1.bf16.msra.mxu0 %v1190
    %1406 = vmatprep.subr.bf16.mxu0 0
    %1407 = vmatpush1.bf16.msra.mxu0 %v1193
    %1408 = vmatprep.subr.bf16.mxu0 0
    %1409 = vmatpush1.bf16.msra.mxu0 %v1196
    %1410 = vmatprep.subr.bf16.mxu0 0
    %1411 = vmatpush1.bf16.msra.mxu0 %v1199
    %1412 = vmatprep.subr.bf16.mxu0 0
    %1413 = vmatpush1.bf16.msra.mxu0 %v1202
    %1414 = vmatprep.subr.bf16.mxu0 0
    %1415 = vmatpush1.bf16.msra.mxu0 %v1205
    %1416 = vmatprep.subr.bf16.mxu0 0
    %1417 = vmatpush1.bf16.msra.mxu0 0
    %1418 = vmatprep.subr.bf16.mxu0 0
    %1419 = vmatpush1.bf16.msra.mxu0 0
    %1420 = vmatprep.subr.bf16.mxu0 0
    %1421 = vmatpush1.bf16.msra.mxu0 0
    %1422 = vmatprep.subr.bf16.mxu0 0
    %1423 = vmatpush1.bf16.msra.mxu0 0
    %1424 = vmatprep.subr.bf16.mxu0 0
    %1425 = vmatpush1.bf16.msra.mxu0 0
    %1426 = vmatprep.subr.bf16.mxu0 0
    %1427 = vmatpush1.bf16.msra.mxu0 0
    %1428 = vmatprep.subr.bf16.mxu0 0
    %1429 = vmatpush1.bf16.msra.mxu0 0
    %1430 = vmatprep.subr.bf16.mxu0 0
    %1431 = vmatpush1.bf16.msra.mxu0 0
    %1432 = vmatprep.mubr.bf16.mxu0 0
    %1433 = vmatmul.mubr.bf16.gmra.mrb[0].mxu0 %v797
    %v1434 = vpop.f32.mrb[0].mxu0
    %v1435 = vadd.f32 %v1395, %v1434
    %v1436 = vpop.f32.mrb[0].mxu0
    %v1437 = vpop.f32.mrb[0].mxu0
    %v1438 = vpop.f32.mrb[0].mxu0
    %1439 = vdwg.mxu0
    %v1440 = vpack.c.bf16 %v1354, %v1354
    %v1441 = vpack.c.bf16 %v1356, %v1356
    %v1442 = vpack.c.bf16 %v1435, %v1435
    %v1443 = vld [vmem:[%s4] sm:$0x7]
    %v1445 = vlaneseq
    %v1446 = vshrl.u32 %v1445, 7
    %v1447 = vsub.s32 0, %v1446
    %v1448 = vrot.slane %v1443, %v1447
    %v1449 = vlaneseq
    %v1450 = vshrl.u32 %v1449, 7
    %v1451 = vsub.s32 1, %v1450
    %v1452 = vrot.slane %v1443, %v1451
    %v1453 = vlaneseq
    %v1454 = vshrl.u32 %v1453, 7
    %v1455 = vsub.s32 2, %v1454
    %v1456 = vrot.slane %v1443, %v1455
    %v1460 = vpack.c.bf16 %v1448, %v1448
    %v1461 = vpack.c.bf16 %v1452, %v1452
    %v1462 = vpack.c.bf16 %v1456, %v1456
    %v1464 = vpack.i.b16 %v1460, %v1460
    %v1466 = vlaneseq
    %v1467 = vshrl.u32 %v1466, 7
    %v1468 = vsub.s32 0, %v1467
    %v1469 = vrot.slane %v1464, %v1468
    %v1471 = vpack.i.b16 %v1461, %v1461
    %v1473 = vlaneseq
    %v1474 = vshrl.u32 %v1473, 7
    %v1475 = vsub.s32 0, %v1474
    %v1476 = vrot.slane %v1471, %v1475
    %v1478 = vpack.i.b16 %v1462, %v1462
    %v1480 = vlaneseq
    %v1481 = vshrl.u32 %v1480, 7
    %v1482 = vsub.s32 0, %v1481
    %v1483 = vrot.slane %v1478, %v1482
    %v1484 = vadd.bf16 %v1440, %v1469
    %v1485 = vadd.bf16 %v1441, %v1476
    %v1486 = vadd.bf16 %v1442, %v1483
    %v1487 = vmul.bf16 %v1484, 1056980736
    %v1488 = vmul.bf16 %v1485, 1056980736
    %v1489 = vmul.bf16 %v1486, 1056980736
    %v1490 = vtanh.bf16.pop %v1487
    %v1491 = vtanh.bf16.pop %v1488
    %v1492 = vtanh.bf16.pop %v1489
    %v1493 = vadd.bf16 %v1490, 1065369472
    %v1494 = vadd.bf16 %v1491, 1065369472
    %v1495 = vadd.bf16 %v1492, 1065369472
    %v1496 = vmul.bf16 %v1493, 1056980736
    %v1497 = vmul.bf16 %v1494, 1056980736
    %v1498 = vmul.bf16 %v1495, 1056980736
    %v1499 = vmul.bf16 %v1484, %v1496
    %v1500 = vmul.bf16 %v1485, %v1497
    %v1501 = vmul.bf16 %v1486, %v1498
    %v1502 = vld [vmem:[#allocation8] sm:$0xff]
    %v1503 = vld [vmem:[#allocation8 + $0x8] sm:$0xf]
    %v1504 = vld [vmem:[#allocation8 + $0xc] sm:$0xff]
    %v1505 = vld [vmem:[#allocation8 + $0x14] sm:$0xf]
    %v1506 = vld [vmem:[#allocation8 + $0x18] sm:$0xff]
    %v1507 = vld [vmem:[#allocation8 + $0x20] sm:$0xf]
    %v1508 = vld [vmem:[#allocation8 + $0x24] sm:$0xff]
    %v1509 = vld [vmem:[#allocation8 + $0x2c] sm:$0xf]
    %v1510 = vld [vmem:[#allocation8 + $0x30] sm:$0xff]
    %v1511 = vld [vmem:[#allocation8 + $0x38] sm:$0xf]
    %v1512 = vld [vmem:[#allocation8 + $0x3c] sm:$0xff]
    %v1513 = vld [vmem:[#allocation8 + $0x44] sm:$0xf]
    %v1514 = vld [vmem:[#allocation8 + $0x48] sm:$0xff]
    %v1515 = vld [vmem:[#allocation8 + $0x50] sm:$0xf]
    %v1516 = vld [vmem:[#allocation8 + $0x54] sm:$0xff]
    %v1517 = vld [vmem:[#allocation8 + $0x5c] sm:$0xf]
    %v1518 = vld [vmem:[#allocation8 + $0x60] sm:$0xff]
    %v1519 = vld [vmem:[#allocation8 + $0x68] sm:$0xf]
    %v1520 = vld [vmem:[#allocation8 + $0x6c] sm:$0xff]
    %v1521 = vld [vmem:[#allocation8 + $0x74] sm:$0xf]
    %v1522 = vld [vmem:[#allocation8 + $0x78] sm:$0xff]
    %v1523 = vld [vmem:[#allocation8 + $0x80] sm:$0xf]
    %v1524 = vld [vmem:[#allocation8 + $0x84] sm:$0xff]
    %v1525 = vld [vmem:[#allocation8 + $0x8c] sm:$0xf]
    %v1526 = vld [vmem:[#allocation8 + $0x90] sm:$0xff]
    %v1527 = vld [vmem:[#allocation8 + $0x98] sm:$0xf]
    %v1528 = vld [vmem:[#allocation8 + $0x9c] sm:$0xff]
    %v1529 = vld [vmem:[#allocation8 + $0xa4] sm:$0xf]
    %v1530 = vld [vmem:[#allocation8 + $0xa8] sm:$0xff]
    %v1531 = vld [vmem:[#allocation8 + $0xb0] sm:$0xf]
    %v1532 = vld [vmem:[#allocation8 + $0xb4] sm:$0xff]
    %v1533 = vld [vmem:[#allocation8 + $0xbc] sm:$0xf]
    %v1534 = vld [vmem:[#allocation8 + $0xc0] sm:$0xff]
    %v1535 = vld [vmem:[#allocation8 + $0xc8] sm:$0xf]
    %v1536 = vld [vmem:[#allocation8 + $0xcc] sm:$0xff]
    %v1537 = vld [vmem:[#allocation8 + $0xd4] sm:$0xf]
    %v1538 = vld [vmem:[#allocation8 + $0xd8] sm:$0xff]
    %v1539 = vld [vmem:[#allocation8 + $0xe0] sm:$0xf]
    %v1540 = vld [vmem:[#allocation8 + $0xe4] sm:$0xff]
    %v1541 = vld [vmem:[#allocation8 + $0xec] sm:$0xf]
    %v1542 = vld [vmem:[#allocation8 + $0xf0] sm:$0xff]
    %v1543 = vld [vmem:[#allocation8 + $0xf8] sm:$0xf]
    %v1544 = vld [vmem:[#allocation8 + $0xfc] sm:$0xff]
    %v1545 = vld [vmem:[#allocation8 + $0x104] sm:$0xf]
    %v1546 = vld [vmem:[#allocation8 + $0x108] sm:$0xff]
    %v1547 = vld [vmem:[#allocation8 + $0x110] sm:$0xf]
    %v1548 = vld [vmem:[#allocation8 + $0x114] sm:$0xff]
    %v1549 = vld [vmem:[#allocation8 + $0x11c] sm:$0xf]
    %v1550 = vld [vmem:[#allocation8 + $0x120] sm:$0xff]
    %v1551 = vld [vmem:[#allocation8 + $0x128] sm:$0xf]
    %v1552 = vld [vmem:[#allocation8 + $0x12c] sm:$0xff]
    %v1553 = vld [vmem:[#allocation8 + $0x134] sm:$0xf]
    %v1554 = vld [vmem:[#allocation8 + $0x138] sm:$0xff]
    %v1555 = vld [vmem:[#allocation8 + $0x140] sm:$0xf]
    %v1556 = vld [vmem:[#allocation8 + $0x144] sm:$0xff]
    %v1557 = vld [vmem:[#allocation8 + $0x14c] sm:$0xf]
    %v1558 = vld [vmem:[#allocation8 + $0x150] sm:$0xff]
    %v1559 = vld [vmem:[#allocation8 + $0x158] sm:$0xf]
    %v1560 = vld [vmem:[#allocation8 + $0x15c] sm:$0xff]
    %v1561 = vld [vmem:[#allocation8 + $0x164] sm:$0xf]
    %v1562 = vld [vmem:[#allocation8 + $0x168] sm:$0xff]
    %v1563 = vld [vmem:[#allocation8 + $0x170] sm:$0xf]
    %v1564 = vld [vmem:[#allocation8 + $0x174] sm:$0xff]
    %v1565 = vld [vmem:[#allocation8 + $0x17c] sm:$0xf]
    %v1566 = vld [vmem:[#allocation8 + $0x180] sm:$0xff]
    %v1567 = vld [vmem:[#allocation8 + $0x188] sm:$0xf]
    %v1568 = vld [vmem:[#allocation8 + $0x18c] sm:$0xff]
    %v1569 = vld [vmem:[#allocation8 + $0x194] sm:$0xf]
    %v1570 = vld [vmem:[#allocation8 + $0x198] sm:$0xff]
    %v1571 = vld [vmem:[#allocation8 + $0x1a0] sm:$0xf]
    %v1572 = vld [vmem:[#allocation8 + $0x1a4] sm:$0xff]
    %v1573 = vld [vmem:[#allocation8 + $0x1ac] sm:$0xf]
    %v1574 = vld [vmem:[#allocation8 + $0x1b0] sm:$0xff]
    %v1575 = vld [vmem:[#allocation8 + $0x1b8] sm:$0xf]
    %v1576 = vld [vmem:[#allocation8 + $0x1bc] sm:$0xff]
    %v1577 = vld [vmem:[#allocation8 + $0x1c4] sm:$0xf]
    %v1578 = vld [vmem:[#allocation8 + $0x1c8] sm:$0xff]
    %v1579 = vld [vmem:[#allocation8 + $0x1d0] sm:$0xf]
    %v1580 = vld [vmem:[#allocation8 + $0x1d4] sm:$0xff]
    %v1581 = vld [vmem:[#allocation8 + $0x1dc] sm:$0xf]
    %v1582 = vld [vmem:[#allocation8 + $0x1e0] sm:$0xff]
    %v1583 = vld [vmem:[#allocation8 + $0x1e8] sm:$0xf]
    %v1584 = vld [vmem:[#allocation8 + $0x1ec] sm:$0xff]
    %v1585 = vld [vmem:[#allocation8 + $0x1f4] sm:$0xf]
    %v1586 = vld [vmem:[#allocation8 + $0x1f8] sm:$0xff]
    %v1587 = vld [vmem:[#allocation8 + $0x200] sm:$0xf]
    %v1588 = vld [vmem:[#allocation8 + $0x204] sm:$0xff]
    %v1589 = vld [vmem:[#allocation8 + $0x20c] sm:$0xf]
    %v1590 = vld [vmem:[#allocation8 + $0x210] sm:$0xff]
    %v1591 = vld [vmem:[#allocation8 + $0x218] sm:$0xf]
    %v1592 = vld [vmem:[#allocation8 + $0x21c] sm:$0xff]
    %v1593 = vld [vmem:[#allocation8 + $0x224] sm:$0xf]
    %v1594 = vld [vmem:[#allocation8 + $0x228] sm:$0xff]
    %v1595 = vld [vmem:[#allocation8 + $0x230] sm:$0xf]
    %v1596 = vld [vmem:[#allocation8 + $0x234] sm:$0xff]
    %v1597 = vld [vmem:[#allocation8 + $0x23c] sm:$0xf]
    %v1694 = vunpack.c.l.b16 %v1502
    %v1695 = vunpack.c.h.b16 %v1502
    %v1696 = vunpack.c.l.b16 %v1503
    %v1697 = vunpack.c.l.b16 %v1504
    %v1698 = vunpack.c.h.b16 %v1504
    %v1699 = vunpack.c.l.b16 %v1505
    %v1700 = vunpack.c.l.b16 %v1506
    %v1701 = vunpack.c.h.b16 %v1506
    %v1702 = vunpack.c.l.b16 %v1507
    %v1703 = vunpack.c.l.b16 %v1508
    %v1704 = vunpack.c.h.b16 %v1508
    %v1705 = vunpack.c.l.b16 %v1509
    %v1706 = vunpack.c.l.b16 %v1510
    %v1707 = vunpack.c.h.b16 %v1510
    %v1708 = vunpack.c.l.b16 %v1511
    %v1709 = vunpack.c.l.b16 %v1512
    %v1710 = vunpack.c.h.b16 %v1512
    %v1711 = vunpack.c.l.b16 %v1513
    %v1712 = vunpack.c.l.b16 %v1514
    %v1713 = vunpack.c.h.b16 %v1514
    %v1714 = vunpack.c.l.b16 %v1515
    %v1715 = vunpack.c.l.b16 %v1516
    %v1716 = vunpack.c.h.b16 %v1516
    %v1717 = vunpack.c.l.b16 %v1517
    %v1718 = vunpack.c.l.b16 %v1518
    %v1719 = vunpack.c.h.b16 %v1518
    %v1720 = vunpack.c.l.b16 %v1519
    %v1721 = vunpack.c.l.b16 %v1520
    %v1722 = vunpack.c.h.b16 %v1520
    %v1723 = vunpack.c.l.b16 %v1521
    %v1724 = vunpack.c.l.b16 %v1522
    %v1725 = vunpack.c.h.b16 %v1522
    %v1726 = vunpack.c.l.b16 %v1523
    %v1727 = vunpack.c.l.b16 %v1524
    %v1728 = vunpack.c.h.b16 %v1524
    %v1729 = vunpack.c.l.b16 %v1525
    %v1730 = vunpack.c.l.b16 %v1526
    %v1731 = vunpack.c.h.b16 %v1526
    %v1732 = vunpack.c.l.b16 %v1527
    %v1733 = vunpack.c.l.b16 %v1528
    %v1734 = vunpack.c.h.b16 %v1528
    %v1735 = vunpack.c.l.b16 %v1529
    %v1736 = vunpack.c.l.b16 %v1530
    %v1737 = vunpack.c.h.b16 %v1530
    %v1738 = vunpack.c.l.b16 %v1531
    %v1739 = vunpack.c.l.b16 %v1532
    %v1740 = vunpack.c.h.b16 %v1532
    %v1741 = vunpack.c.l.b16 %v1533
    %v1742 = vunpack.c.l.b16 %v1534
    %v1743 = vunpack.c.h.b16 %v1534
    %v1744 = vunpack.c.l.b16 %v1535
    %v1745 = vunpack.c.l.b16 %v1536
    %v1746 = vunpack.c.h.b16 %v1536
    %v1747 = vunpack.c.l.b16 %v1537
    %v1748 = vunpack.c.l.b16 %v1538
    %v1749 = vunpack.c.h.b16 %v1538
    %v1750 = vunpack.c.l.b16 %v1539
    %v1751 = vunpack.c.l.b16 %v1540
    %v1752 = vunpack.c.h.b16 %v1540
    %v1753 = vunpack.c.l.b16 %v1541
    %v1754 = vunpack.c.l.b16 %v1542
    %v1755 = vunpack.c.h.b16 %v1542
    %v1756 = vunpack.c.l.b16 %v1543
    %v1757 = vunpack.c.l.b16 %v1544
    %v1758 = vunpack.c.h.b16 %v1544
    %v1759 = vunpack.c.l.b16 %v1545
    %v1760 = vunpack.c.l.b16 %v1546
    %v1761 = vunpack.c.h.b16 %v1546
    %v1762 = vunpack.c.l.b16 %v1547
    %v1763 = vunpack.c.l.b16 %v1548
    %v1764 = vunpack.c.h.b16 %v1548
    %v1765 = vunpack.c.l.b16 %v1549
    %v1766 = vunpack.c.l.b16 %v1550
    %v1767 = vunpack.c.h.b16 %v1550
    %v1768 = vunpack.c.l.b16 %v1551
    %v1769 = vunpack.c.l.b16 %v1552
    %v1770 = vunpack.c.h.b16 %v1552
    %v1771 = vunpack.c.l.b16 %v1553
    %v1772 = vunpack.c.l.b16 %v1554
    %v1773 = vunpack.c.h.b16 %v1554
    %v1774 = vunpack.c.l.b16 %v1555
    %v1775 = vunpack.c.l.b16 %v1556
    %v1776 = vunpack.c.h.b16 %v1556
    %v1777 = vunpack.c.l.b16 %v1557
    %v1778 = vunpack.c.l.b16 %v1558
    %v1779 = vunpack.c.h.b16 %v1558
    %v1780 = vunpack.c.l.b16 %v1559
    %v1781 = vunpack.c.l.b16 %v1560
    %v1782 = vunpack.c.h.b16 %v1560
    %v1783 = vunpack.c.l.b16 %v1561
    %v1784 = vunpack.c.l.b16 %v1562
    %v1785 = vunpack.c.h.b16 %v1562
    %v1786 = vunpack.c.l.b16 %v1563
    %v1787 = vunpack.c.l.b16 %v1564
    %v1788 = vunpack.c.h.b16 %v1564
    %v1789 = vunpack.c.l.b16 %v1565
    %v1790 = vunpack.c.l.b16 %v1566
    %v1791 = vunpack.c.h.b16 %v1566
    %v1792 = vunpack.c.l.b16 %v1567
    %v1793 = vunpack.c.l.b16 %v1568
    %v1794 = vunpack.c.h.b16 %v1568
    %v1795 = vunpack.c.l.b16 %v1569
    %v1796 = vunpack.c.l.b16 %v1570
    %v1797 = vunpack.c.h.b16 %v1570
    %v1798 = vunpack.c.l.b16 %v1571
    %v1799 = vunpack.c.l.b16 %v1572
    %v1800 = vunpack.c.h.b16 %v1572
    %v1801 = vunpack.c.l.b16 %v1573
    %v1802 = vunpack.c.l.b16 %v1574
    %v1803 = vunpack.c.h.b16 %v1574
    %v1804 = vunpack.c.l.b16 %v1575
    %v1805 = vunpack.c.l.b16 %v1576
    %v1806 = vunpack.c.h.b16 %v1576
    %v1807 = vunpack.c.l.b16 %v1577
    %v1808 = vunpack.c.l.b16 %v1578
    %v1809 = vunpack.c.h.b16 %v1578
    %v1810 = vunpack.c.l.b16 %v1579
    %v1811 = vunpack.c.l.b16 %v1580
    %v1812 = vunpack.c.h.b16 %v1580
    %v1813 = vunpack.c.l.b16 %v1581
    %v1814 = vunpack.c.l.b16 %v1582
    %v1815 = vunpack.c.h.b16 %v1582
    %v1816 = vunpack.c.l.b16 %v1583
    %v1817 = vunpack.c.l.b16 %v1584
    %v1818 = vunpack.c.h.b16 %v1584
    %v1819 = vunpack.c.l.b16 %v1585
    %v1820 = vunpack.c.l.b16 %v1586
    %v1821 = vunpack.c.h.b16 %v1586
    %v1822 = vunpack.c.l.b16 %v1587
    %v1823 = vunpack.c.l.b16 %v1588
    %v1824 = vunpack.c.h.b16 %v1588
    %v1825 = vunpack.c.l.b16 %v1589
    %v1826 = vunpack.c.l.b16 %v1590
    %v1827 = vunpack.c.h.b16 %v1590
    %v1828 = vunpack.c.l.b16 %v1591
    %v1829 = vunpack.c.l.b16 %v1592
    %v1830 = vunpack.c.h.b16 %v1592
    %v1831 = vunpack.c.l.b16 %v1593
    %v1832 = vunpack.c.l.b16 %v1594
    %v1833 = vunpack.c.h.b16 %v1594
    %v1834 = vunpack.c.l.b16 %v1595
    %v1835 = vunpack.c.l.b16 %v1596
    %v1836 = vunpack.c.h.b16 %v1596
    %v1837 = vunpack.c.l.b16 %v1597
    %v1838 = vpack.c.b16 %v1697, %v1694
    %v1839 = vpack.c.b16 %v1698, %v1695
    %v1840 = vpack.c.b16 %v1699, %v1696
    %v1841 = vpack.c.b16 %v1703, %v1700
    %v1842 = vpack.c.b16 %v1704, %v1701
    %v1843 = vpack.c.b16 %v1705, %v1702
    %v1844 = vpack.c.b16 %v1709, %v1706
    %v1845 = vpack.c.b16 %v1710, %v1707
    %v1846 = vpack.c.b16 %v1711, %v1708
    %v1847 = vpack.c.b16 %v1715, %v1712
    %v1848 = vpack.c.b16 %v1716, %v1713
    %v1849 = vpack.c.b16 %v1717, %v1714
    %v1850 = vpack.c.b16 %v1721, %v1718
    %v1851 = vpack.c.b16 %v1722, %v1719
    %v1852 = vpack.c.b16 %v1723, %v1720
    %v1853 = vpack.c.b16 %v1727, %v1724
    %v1854 = vpack.c.b16 %v1728, %v1725
    %v1855 = vpack.c.b16 %v1729, %v1726
    %v1856 = vpack.c.b16 %v1733, %v1730
    %v1857 = vpack.c.b16 %v1734, %v1731
    %v1858 = vpack.c.b16 %v1735, %v1732
    %v1859 = vpack.c.b16 %v1739, %v1736
    %v1860 = vpack.c.b16 %v1740, %v1737
    %v1861 = vpack.c.b16 %v1741, %v1738
    %v1862 = vpack.c.b16 %v1745, %v1742
    %v1863 = vpack.c.b16 %v1746, %v1743
    %v1864 = vpack.c.b16 %v1747, %v1744
    %v1865 = vpack.c.b16 %v1751, %v1748
    %v1866 = vpack.c.b16 %v1752, %v1749
    %v1867 = vpack.c.b16 %v1753, %v1750
    %v1868 = vpack.c.b16 %v1757, %v1754
    %v1869 = vpack.c.b16 %v1758, %v1755
    %v1870 = vpack.c.b16 %v1759, %v1756
    %v1871 = vpack.c.b16 %v1763, %v1760
    %v1872 = vpack.c.b16 %v1764, %v1761
    %v1873 = vpack.c.b16 %v1765, %v1762
    %v1874 = vpack.c.b16 %v1769, %v1766
    %v1875 = vpack.c.b16 %v1770, %v1767
    %v1876 = vpack.c.b16 %v1771, %v1768
    %v1877 = vpack.c.b16 %v1775, %v1772
    %v1878 = vpack.c.b16 %v1776, %v1773
    %v1879 = vpack.c.b16 %v1777, %v1774
    %v1880 = vpack.c.b16 %v1781, %v1778
    %v1881 = vpack.c.b16 %v1782, %v1779
    %v1882 = vpack.c.b16 %v1783, %v1780
    %v1883 = vpack.c.b16 %v1787, %v1784
    %v1884 = vpack.c.b16 %v1788, %v1785
    %v1885 = vpack.c.b16 %v1789, %v1786
    %v1886 = vpack.c.b16 %v1793, %v1790
    %v1887 = vpack.c.b16 %v1794, %v1791
    %v1888 = vpack.c.b16 %v1795, %v1792
    %v1889 = vpack.c.b16 %v1799, %v1796
    %v1890 = vpack.c.b16 %v1800, %v1797
    %v1891 = vpack.c.b16 %v1801, %v1798
    %v1892 = vpack.c.b16 %v1805, %v1802
    %v1893 = vpack.c.b16 %v1806, %v1803
    %v1894 = vpack.c.b16 %v1807, %v1804
    %v1895 = vpack.c.b16 %v1811, %v1808
    %v1896 = vpack.c.b16 %v1812, %v1809
    %v1897 = vpack.c.b16 %v1813, %v1810
    %v1898 = vpack.c.b16 %v1817, %v1814
    %v1899 = vpack.c.b16 %v1818, %v1815
    %v1900 = vpack.c.b16 %v1819, %v1816
    %v1901 = vpack.c.b16 %v1823, %v1820
    %v1902 = vpack.c.b16 %v1824, %v1821
    %v1903 = vpack.c.b16 %v1825, %v1822
    %v1904 = vpack.c.b16 %v1829, %v1826
    %v1905 = vpack.c.b16 %v1830, %v1827
    %v1906 = vpack.c.b16 %v1831, %v1828
    %v1907 = vpack.c.b16 %v1835, %v1832
    %v1908 = vpack.c.b16 %v1836, %v1833
    %v1909 = vpack.c.b16 %v1837, %v1834
    %1982 = vmatprep.subr.bf16.mxu0 %v1839
    %1983 = vmatpush1.bf16.msra.mxu0 %v1838
    %1984 = vmatprep.subr.bf16.mxu0 %v1842
    %1985 = vmatpush1.bf16.msra.mxu0 %v1841
    %1986 = vmatprep.subr.bf16.mxu0 %v1845
    %1987 = vmatpush1.bf16.msra.mxu0 %v1844
    %1988 = vmatprep.subr.bf16.mxu0 %v1848
    %1989 = vmatpush1.bf16.msra.mxu0 %v1847
    %1990 = vmatprep.subr.bf16.mxu0 %v1851
    %1991 = vmatpush1.bf16.msra.mxu0 %v1850
    %1992 = vmatprep.subr.bf16.mxu0 %v1854
    %1993 = vmatpush1.bf16.msra.mxu0 %v1853
    %1994 = vmatprep.subr.bf16.mxu0 %v1857
    %1995 = vmatpush1.bf16.msra.mxu0 %v1856
    %1996 = vmatprep.subr.bf16.mxu0 %v1860
    %1997 = vmatpush1.bf16.msra.mxu0 %v1859
    %1998 = vmatprep.subr.bf16.mxu0 %v1863
    %1999 = vmatpush1.bf16.msra.mxu0 %v1862
    %2000 = vmatprep.subr.bf16.mxu0 %v1866
    %2001 = vmatpush1.bf16.msra.mxu0 %v1865
    %2002 = vmatprep.subr.bf16.mxu0 %v1869
    %2003 = vmatpush1.bf16.msra.mxu0 %v1868
    %2004 = vmatprep.subr.bf16.mxu0 %v1872
    %2005 = vmatpush1.bf16.msra.mxu0 %v1871
    %2006 = vmatprep.subr.bf16.mxu0 %v1875
    %2007 = vmatpush1.bf16.msra.mxu0 %v1874
    %2008 = vmatprep.subr.bf16.mxu0 %v1878
    %2009 = vmatpush1.bf16.msra.mxu0 %v1877
    %2010 = vmatprep.subr.bf16.mxu0 %v1881
    %2011 = vmatpush1.bf16.msra.mxu0 %v1880
    %2012 = vmatprep.subr.bf16.mxu0 %v1884
    %2013 = vmatpush1.bf16.msra.mxu0 %v1883
    %2014 = vmatprep.mubr.bf16.mxu0 %v1500
    %2015 = vmatmul.mubr.bf16.gmra.mrb[0].mxu0 %v1499
    %v2016 = vpop.f32.mrb[0].mxu0
    %v2017 = vadd.f32 0.0, %v2016
    %v2018 = vpop.f32.mrb[0].mxu0
    %v2019 = vadd.f32 0.0, %v2018
    %v2020 = vpop.f32.mrb[0].mxu0
    %v2021 = vpop.f32.mrb[0].mxu0
    %2022 = vdwg.mxu0
    %2023 = vmatprep.subr.bf16.mxu0 %v1887
    %2024 = vmatpush1.bf16.msra.mxu0 %v1886
    %2025 = vmatprep.subr.bf16.mxu0 %v1890
    %2026 = vmatpush1.bf16.msra.mxu0 %v1889
    %2027 = vmatprep.subr.bf16.mxu0 %v1893
    %2028 = vmatpush1.bf16.msra.mxu0 %v1892
    %2029 = vmatprep.subr.bf16.mxu0 %v1896
    %2030 = vmatpush1.bf16.msra.mxu0 %v1895
    %2031 = vmatprep.subr.bf16.mxu0 %v1899
    %2032 = vmatpush1.bf16.msra.mxu0 %v1898
    %2033 = vmatprep.subr.bf16.mxu0 %v1902
    %2034 = vmatpush1.bf16.msra.mxu0 %v1901
    %2035 = vmatprep.subr.bf16.mxu0 %v1905
    %2036 = vmatpush1.bf16.msra.mxu0 %v1904
    %2037 = vmatprep.subr.bf16.mxu0 %v1908
    %2038 = vmatpush1.bf16.msra.mxu0 %v1907
    %2039 = vmatprep.subr.bf16.mxu0 0
    %2040 = vmatpush1.bf16.msra.mxu0 0
    %2041 = vmatprep.subr.bf16.mxu0 0
    %2042 = vmatpush1.bf16.msra.mxu0 0
    %2043 = vmatprep.subr.bf16.mxu0 0
    %2044 = vmatpush1.bf16.msra.mxu0 0
    %2045 = vmatprep.subr.bf16.mxu0 0
    %2046 = vmatpush1.bf16.msra.mxu0 0
    %2047 = vmatprep.subr.bf16.mxu0 0
    %2048 = vmatpush1.bf16.msra.mxu0 0
    %2049 = vmatprep.subr.bf16.mxu0 0
    %2050 = vmatpush1.bf16.msra.mxu0 0
    %2051 = vmatprep.subr.bf16.mxu0 0
    %2052 = vmatpush1.bf16.msra.mxu0 0
    %2053 = vmatprep.subr.bf16.mxu0 0
    %2054 = vmatpush1.bf16.msra.mxu0 0
    %2055 = vmatprep.mubr.bf16.mxu0 0
    %2056 = vmatmul.mubr.bf16.gmra.mrb[0].mxu0 %v1501
    %v2057 = vpop.f32.mrb[0].mxu0
    %v2058 = vadd.f32 %v2017, %v2057
    %v2059 = vpop.f32.mrb[0].mxu0
    %v2060 = vadd.f32 %v2019, %v2059
    %v2061 = vpop.f32.mrb[0].mxu0
    %v2062 = vpop.f32.mrb[0].mxu0
    %2063 = vdwg.mxu0
    %2064 = vmatprep.subr.bf16.mxu0 0
    %2065 = vmatpush1.bf16.msra.mxu0 %v1840
    %2066 = vmatprep.subr.bf16.mxu0 0
    %2067 = vmatpush1.bf16.msra.mxu0 %v1843
    %2068 = vmatprep.subr.bf16.mxu0 0
    %2069 = vmatpush1.bf16.msra.mxu0 %v1846
    %2070 = vmatprep.subr.bf16.mxu0 0
    %2071 = vmatpush1.bf16.msra.mxu0 %v1849
    %2072 = vmatprep.subr.bf16.mxu0 0
    %2073 = vmatpush1.bf16.msra.mxu0 %v1852
    %2074 = vmatprep.subr.bf16.mxu0 0
    %2075 = vmatpush1.bf16.msra.mxu0 %v1855
    %2076 = vmatprep.subr.bf16.mxu0 0
    %2077 = vmatpush1.bf16.msra.mxu0 %v1858
    %2078 = vmatprep.subr.bf16.mxu0 0
    %2079 = vmatpush1.bf16.msra.mxu0 %v1861
    %2080 = vmatprep.subr.bf16.mxu0 0
    %2081 = vmatpush1.bf16.msra.mxu0 %v1864
    %2082 = vmatprep.subr.bf16.mxu0 0
    %2083 = vmatpush1.bf16.msra.mxu0 %v1867
    %2084 = vmatprep.subr.bf16.mxu0 0
    %2085 = vmatpush1.bf16.msra.mxu0 %v1870
    %2086 = vmatprep.subr.bf16.mxu0 0
    %2087 = vmatpush1.bf16.msra.mxu0 %v1873
    %2088 = vmatprep.subr.bf16.mxu0 0
    %2089 = vmatpush1.bf16.msra.mxu0 %v1876
    %2090 = vmatprep.subr.bf16.mxu0 0
    %2091 = vmatpush1.bf16.msra.mxu0 %v1879
    %2092 = vmatprep.subr.bf16.mxu0 0
    %2093 = vmatpush1.bf16.msra.mxu0 %v1882
    %2094 = vmatprep.subr.bf16.mxu0 0
    %2095 = vmatpush1.bf16.msra.mxu0 %v1885
    %2096 = vmatprep.mubr.bf16.mxu0 %v1500
    %2097 = vmatmul.mubr.bf16.gmra.mrb[0].mxu0 %v1499
    %v2098 = vpop.f32.mrb[0].mxu0
    %v2099 = vadd.f32 0.0, %v2098
    %v2100 = vpop.f32.mrb[0].mxu0
    %v2101 = vpop.f32.mrb[0].mxu0
    %v2102 = vpop.f32.mrb[0].mxu0
    %2103 = vdwg.mxu0
    %2104 = vmatprep.subr.bf16.mxu0 0
    %2105 = vmatpush1.bf16.msra.mxu0 %v1888
    %2106 = vmatprep.subr.bf16.mxu0 0
    %2107 = vmatpush1.bf16.msra.mxu0 %v1891
    %2108 = vmatprep.subr.bf16.mxu0 0
    %2109 = vmatpush1.bf16.msra.mxu0 %v1894
    %2110 = vmatprep.subr.bf16.mxu0 0
    %2111 = vmatpush1.bf16.msra.mxu0 %v1897
    %2112 = vmatprep.subr.bf16.mxu0 0
    %2113 = vmatpush1.bf16.msra.mxu0 %v1900
    %2114 = vmatprep.subr.bf16.mxu0 0
    %2115 = vmatpush1.bf16.msra.mxu0 %v1903
    %2116 = vmatprep.subr.bf16.mxu0 0
    %2117 = vmatpush1.bf16.msra.mxu0 %v1906
    %2118 = vmatprep.subr.bf16.mxu0 0
    %2119 = vmatpush1.bf16.msra.mxu0 %v1909
    %2120 = vmatprep.subr.bf16.mxu0 0
    %2121 = vmatpush1.bf16.msra.mxu0 0
    %2122 = vmatprep.subr.bf16.mxu0 0
    %2123 = vmatpush1.bf16.msra.mxu0 0
    %2124 = vmatprep.subr.bf16.mxu0 0
    %2125 = vmatpush1.bf16.msra.mxu0 0
    %2126 = vmatprep.subr.bf16.mxu0 0
    %2127 = vmatpush1.bf16.msra.mxu0 0
    %2128 = vmatprep.subr.bf16.mxu0 0
    %2129 = vmatpush1.bf16.msra.mxu0 0
    %2130 = vmatprep.subr.bf16.mxu0 0
    %2131 = vmatpush1.bf16.msra.mxu0 0
    %2132 = vmatprep.subr.bf16.mxu0 0
    %2133 = vmatpush1.bf16.msra.mxu0 0
    %2134 = vmatprep.subr.bf16.mxu0 0
    %2135 = vmatpush1.bf16.msra.mxu0 0
    %2136 = vmatprep.mubr.bf16.mxu0 0
    %2137 = vmatmul.mubr.bf16.gmra.mrb[0].mxu0 %v1501
    %v2138 = vpop.f32.mrb[0].mxu0
    %v2139 = vadd.f32 %v2099, %v2138
    %v2140 = vpop.f32.mrb[0].mxu0
    %v2141 = vpop.f32.mrb[0].mxu0
    %v2142 = vpop.f32.mrb[0].mxu0
    %2143 = vdwg.mxu0
    %v2144 = vpack.c.bf16 %v2058, %v2058
    %v2145 = vpack.c.bf16 %v2060, %v2060
    %v2146 = vpack.c.bf16 %v2139, %v2139
    %v2147 = vld [vmem:[%s6] sm:$0x7]
    %v2149 = vlaneseq
    %v2150 = vshrl.u32 %v2149, 7
    %v2151 = vsub.s32 0, %v2150
    %v2152 = vrot.slane %v2147, %v2151
    %v2153 = vlaneseq
    %v2154 = vshrl.u32 %v2153, 7
    %v2155 = vsub.s32 1, %v2154
    %v2156 = vrot.slane %v2147, %v2155
    %v2157 = vlaneseq
    %v2158 = vshrl.u32 %v2157, 7
    %v2159 = vsub.s32 2, %v2158
    %v2160 = vrot.slane %v2147, %v2159
    %v2164 = vpack.c.bf16 %v2152, %v2152
    %v2165 = vpack.c.bf16 %v2156, %v2156
    %v2166 = vpack.c.bf16 %v2160, %v2160
    %v2168 = vpack.i.b16 %v2164, %v2164
    %v2170 = vlaneseq
    %v2171 = vshrl.u32 %v2170, 7
    %v2172 = vsub.s32 0, %v2171
    %v2173 = vrot.slane %v2168, %v2172
    %v2175 = vpack.i.b16 %v2165, %v2165
    %v2177 = vlaneseq
    %v2178 = vshrl.u32 %v2177, 7
    %v2179 = vsub.s32 0, %v2178
    %v2180 = vrot.slane %v2175, %v2179
    %v2182 = vpack.i.b16 %v2166, %v2166
    %v2184 = vlaneseq
    %v2185 = vshrl.u32 %v2184, 7
    %v2186 = vsub.s32 0, %v2185
    %v2187 = vrot.slane %v2182, %v2186
    %v2188 = vadd.bf16 %v2144, %v2173
    %v2189 = vadd.bf16 %v2145, %v2180
    %v2190 = vadd.bf16 %v2146, %v2187
    %v2191 = vmul.bf16 %v2188, 1056980736
    %v2192 = vmul.bf16 %v2189, 1056980736
    %v2193 = vmul.bf16 %v2190, 1056980736
    %v2194 = vtanh.bf16.pop %v2191
    %v2195 = vtanh.bf16.pop %v2192
    %v2196 = vtanh.bf16.pop %v2193
    %v2197 = vadd.bf16 %v2194, 1065369472
    %v2198 = vadd.bf16 %v2195, 1065369472
    %v2199 = vadd.bf16 %v2196, 1065369472
    %v2200 = vmul.bf16 %v2197, 1056980736
    %v2201 = vmul.bf16 %v2198, 1056980736
    %v2202 = vmul.bf16 %v2199, 1056980736
    %v2203 = vmul.bf16 %v2188, %v2200
    %v2204 = vmul.bf16 %v2189, %v2201
    %v2205 = vmul.bf16 %v2190, %v2202
    %v2206 = vld [vmem:[#allocation10] sm:$0xf]
    %v2207 = vld [vmem:[#allocation10 + $0x4] sm:$0xf]
    %v2208 = vld [vmem:[#allocation10 + $0x8] sm:$0xf]
    %v2209 = vld [vmem:[#allocation10 + $0xc] sm:$0xf]
    %v2210 = vld [vmem:[#allocation10 + $0x10] sm:$0xf]
    %v2211 = vld [vmem:[#allocation10 + $0x14] sm:$0xf]
    %v2212 = vld [vmem:[#allocation10 + $0x18] sm:$0xf]
    %v2213 = vld [vmem:[#allocation10 + $0x1c] sm:$0xf]
    %v2214 = vld [vmem:[#allocation10 + $0x20] sm:$0xf]
    %v2215 = vld [vmem:[#allocation10 + $0x24] sm:$0xf]
    %v2216 = vld [vmem:[#allocation10 + $0x28] sm:$0xf]
    %v2217 = vld [vmem:[#allocation10 + $0x2c] sm:$0xf]
    %v2218 = vld [vmem:[#allocation10 + $0x30] sm:$0xf]
    %v2219 = vld [vmem:[#allocation10 + $0x34] sm:$0xf]
    %v2220 = vld [vmem:[#allocation10 + $0x38] sm:$0xf]
    %v2221 = vld [vmem:[#allocation10 + $0x3c] sm:$0xf]
    %v2222 = vld [vmem:[#allocation10 + $0x40] sm:$0xf]
    %v2223 = vld [vmem:[#allocation10 + $0x44] sm:$0xf]
    %v2224 = vld [vmem:[#allocation10 + $0x48] sm:$0xf]
    %v2225 = vld [vmem:[#allocation10 + $0x4c] sm:$0xf]
    %v2226 = vld [vmem:[#allocation10 + $0x50] sm:$0xf]
    %v2227 = vld [vmem:[#allocation10 + $0x54] sm:$0xf]
    %v2228 = vld [vmem:[#allocation10 + $0x58] sm:$0xf]
    %v2229 = vld [vmem:[#allocation10 + $0x5c] sm:$0xf]
    %v2230 = vld [vmem:[#allocation10 + $0x60] sm:$0xf]
    %v2231 = vld [vmem:[#allocation10 + $0x64] sm:$0xf]
    %v2232 = vld [vmem:[#allocation10 + $0x68] sm:$0xf]
    %v2233 = vld [vmem:[#allocation10 + $0x6c] sm:$0xf]
    %v2234 = vld [vmem:[#allocation10 + $0x70] sm:$0xf]
    %v2235 = vld [vmem:[#allocation10 + $0x74] sm:$0xf]
    %v2236 = vld [vmem:[#allocation10 + $0x78] sm:$0xf]
    %v2237 = vld [vmem:[#allocation10 + $0x7c] sm:$0xf]
    %v2238 = vld [vmem:[#allocation10 + $0x80] sm:$0xf]
    %v2239 = vld [vmem:[#allocation10 + $0x84] sm:$0xf]
    %v2240 = vld [vmem:[#allocation10 + $0x88] sm:$0xf]
    %v2241 = vld [vmem:[#allocation10 + $0x8c] sm:$0xf]
    %v2242 = vld [vmem:[#allocation10 + $0x90] sm:$0xf]
    %v2243 = vld [vmem:[#allocation10 + $0x94] sm:$0xf]
    %v2244 = vld [vmem:[#allocation10 + $0x98] sm:$0xf]
    %v2245 = vld [vmem:[#allocation10 + $0x9c] sm:$0xf]
    %v2246 = vld [vmem:[#allocation10 + $0xa0] sm:$0xf]
    %v2247 = vld [vmem:[#allocation10 + $0xa4] sm:$0xf]
    %v2248 = vld [vmem:[#allocation10 + $0xa8] sm:$0xf]
    %v2249 = vld [vmem:[#allocation10 + $0xac] sm:$0xf]
    %v2250 = vld [vmem:[#allocation10 + $0xb0] sm:$0xf]
    %v2251 = vld [vmem:[#allocation10 + $0xb4] sm:$0xf]
    %v2252 = vld [vmem:[#allocation10 + $0xb8] sm:$0xf]
    %v2253 = vld [vmem:[#allocation10 + $0xbc] sm:$0xf]
    %v2254 = vld [vmem:[%s8] sm:$0x1]
    %v2256 = vlaneseq
    %v2257 = vshrl.u32 %v2256, 7
    %v2258 = vsub.s32 0, %v2257
    %v2259 = vrot.slane %v2254, %v2258
    %v2309 = vunpack.c.l.b16 %v2206
    %v2310 = vunpack.c.l.b16 %v2207
    %v2311 = vunpack.c.l.b16 %v2208
    %v2312 = vunpack.c.l.b16 %v2209
    %v2313 = vunpack.c.l.b16 %v2210
    %v2314 = vunpack.c.l.b16 %v2211
    %v2315 = vunpack.c.l.b16 %v2212
    %v2316 = vunpack.c.l.b16 %v2213
    %v2317 = vunpack.c.l.b16 %v2214
    %v2318 = vunpack.c.l.b16 %v2215
    %v2319 = vunpack.c.l.b16 %v2216
    %v2320 = vunpack.c.l.b16 %v2217
    %v2321 = vunpack.c.l.b16 %v2218
    %v2322 = vunpack.c.l.b16 %v2219
    %v2323 = vunpack.c.l.b16 %v2220
    %v2324 = vunpack.c.l.b16 %v2221
    %v2325 = vunpack.c.l.b16 %v2222
    %v2326 = vunpack.c.l.b16 %v2223
    %v2327 = vunpack.c.l.b16 %v2224
    %v2328 = vunpack.c.l.b16 %v2225
    %v2329 = vunpack.c.l.b16 %v2226
    %v2330 = vunpack.c.l.b16 %v2227
    %v2331 = vunpack.c.l.b16 %v2228
    %v2332 = vunpack.c.l.b16 %v2229
    %v2333 = vunpack.c.l.b16 %v2230
    %v2334 = vunpack.c.l.b16 %v2231
    %v2335 = vunpack.c.l.b16 %v2232
    %v2336 = vunpack.c.l.b16 %v2233
    %v2337 = vunpack.c.l.b16 %v2234
    %v2338 = vunpack.c.l.b16 %v2235
    %v2339 = vunpack.c.l.b16 %v2236
    %v2340 = vunpack.c.l.b16 %v2237
    %v2341 = vunpack.c.l.b16 %v2238
    %v2342 = vunpack.c.l.b16 %v2239
    %v2343 = vunpack.c.l.b16 %v2240
    %v2344 = vunpack.c.l.b16 %v2241
    %v2345 = vunpack.c.l.b16 %v2242
    %v2346 = vunpack.c.l.b16 %v2243
    %v2347 = vunpack.c.l.b16 %v2244
    %v2348 = vunpack.c.l.b16 %v2245
    %v2349 = vunpack.c.l.b16 %v2246
    %v2350 = vunpack.c.l.b16 %v2247
    %v2351 = vunpack.c.l.b16 %v2248
    %v2352 = vunpack.c.l.b16 %v2249
    %v2353 = vunpack.c.l.b16 %v2250
    %v2354 = vunpack.c.l.b16 %v2251
    %v2355 = vunpack.c.l.b16 %v2252
    %v2356 = vunpack.c.l.b16 %v2253
    %v2357 = vpack.c.b16 %v2310, %v2309
    %v2358 = vpack.c.b16 %v2312, %v2311
    %v2359 = vpack.c.b16 %v2314, %v2313
    %v2360 = vpack.c.b16 %v2316, %v2315
    %v2361 = vpack.c.b16 %v2318, %v2317
    %v2362 = vpack.c.b16 %v2320, %v2319
    %v2363 = vpack.c.b16 %v2322, %v2321
    %v2364 = vpack.c.b16 %v2324, %v2323
    %v2365 = vpack.c.b16 %v2326, %v2325
    %v2366 = vpack.c.b16 %v2328, %v2327
    %v2367 = vpack.c.b16 %v2330, %v2329
    %v2368 = vpack.c.b16 %v2332, %v2331
    %v2369 = vpack.c.b16 %v2334, %v2333
    %v2370 = vpack.c.b16 %v2336, %v2335
    %v2371 = vpack.c.b16 %v2338, %v2337
    %v2372 = vpack.c.b16 %v2340, %v2339
    %v2373 = vpack.c.b16 %v2342, %v2341
    %v2374 = vpack.c.b16 %v2344, %v2343
    %v2375 = vpack.c.b16 %v2346, %v2345
    %v2376 = vpack.c.b16 %v2348, %v2347
    %v2377 = vpack.c.b16 %v2350, %v2349
    %v2378 = vpack.c.b16 %v2352, %v2351
    %v2379 = vpack.c.b16 %v2354, %v2353
    %v2380 = vpack.c.b16 %v2356, %v2355
    %2405 = vmatprep.subr.bf16.mxu0 0
    %2406 = vmatpush1.bf16.msra.mxu0 %v2357
    %2407 = vmatprep.subr.bf16.mxu0 0
    %2408 = vmatpush1.bf16.msra.mxu0 %v2358
    %2409 = vmatprep.subr.bf16.mxu0 0
    %2410 = vmatpush1.bf16.msra.mxu0 %v2359
    %2411 = vmatprep.subr.bf16.mxu0 0
    %2412 = vmatpush1.bf16.msra.mxu0 %v2360
    %2413 = vmatprep.subr.bf16.mxu0 0
    %2414 = vmatpush1.bf16.msra.mxu0 %v2361
    %2415 = vmatprep.subr.bf16.mxu0 0
    %2416 = vmatpush1.bf16.msra.mxu0 %v2362
    %2417 = vmatprep.subr.bf16.mxu0 0
    %2418 = vmatpush1.bf16.msra.mxu0 %v2363
    %2419 = vmatprep.subr.bf16.mxu0 0
    %2420 = vmatpush1.bf16.msra.mxu0 %v2364
    %2421 = vmatprep.subr.bf16.mxu0 0
    %2422 = vmatpush1.bf16.msra.mxu0 %v2365
    %2423 = vmatprep.subr.bf16.mxu0 0
    %2424 = vmatpush1.bf16.msra.mxu0 %v2366
    %2425 = vmatprep.subr.bf16.mxu0 0
    %2426 = vmatpush1.bf16.msra.mxu0 %v2367
    %2427 = vmatprep.subr.bf16.mxu0 0
    %2428 = vmatpush1.bf16.msra.mxu0 %v2368
    %2429 = vmatprep.subr.bf16.mxu0 0
    %2430 = vmatpush1.bf16.msra.mxu0 %v2369
    %2431 = vmatprep.subr.bf16.mxu0 0
    %2432 = vmatpush1.bf16.msra.mxu0 %v2370
    %2433 = vmatprep.subr.bf16.mxu0 0
    %2434 = vmatpush1.bf16.msra.mxu0 %v2371
    %2435 = vmatprep.subr.bf16.mxu0 0
    %2436 = vmatpush1.bf16.msra.mxu0 %v2372
    %2437 = vmatprep.mubr.bf16.mxu0 %v2204
    %2438 = vmatmul.mubr.bf16.gmra.mrb[0].mxu0 %v2203
    %v2439 = vpop.f32.mrb[0].mxu0
    %v2440 = vadd.f32 %v2259, %v2439
    %v2441 = vpop.f32.mrb[0].mxu0
    %v2442 = vpop.f32.mrb[0].mxu0
    %v2443 = vpop.f32.mrb[0].mxu0
    %2444 = vdwg.mxu0
    %2445 = vmatprep.subr.bf16.mxu0 0
    %2446 = vmatpush1.bf16.msra.mxu0 %v2373
    %2447 = vmatprep.subr.bf16.mxu0 0
    %2448 = vmatpush1.bf16.msra.mxu0 %v2374
    %2449 = vmatprep.subr.bf16.mxu0 0
    %2450 = vmatpush1.bf16.msra.mxu0 %v2375
    %2451 = vmatprep.subr.bf16.mxu0 0
    %2452 = vmatpush1.bf16.msra.mxu0 %v2376
    %2453 = vmatprep.subr.bf16.mxu0 0
    %2454 = vmatpush1.bf16.msra.mxu0 %v2377
    %2455 = vmatprep.subr.bf16.mxu0 0
    %2456 = vmatpush1.bf16.msra.mxu0 %v2378
    %2457 = vmatprep.subr.bf16.mxu0 0
    %2458 = vmatpush1.bf16.msra.mxu0 %v2379
    %2459 = vmatprep.subr.bf16.mxu0 0
    %2460 = vmatpush1.bf16.msra.mxu0 %v2380
    %2461 = vmatprep.subr.bf16.mxu0 0
    %2462 = vmatpush1.bf16.msra.mxu0 0
    %2463 = vmatprep.subr.bf16.mxu0 0
    %2464 = vmatpush1.bf16.msra.mxu0 0
    %2465 = vmatprep.subr.bf16.mxu0 0
    %2466 = vmatpush1.bf16.msra.mxu0 0
    %2467 = vmatprep.subr.bf16.mxu0 0
    %2468 = vmatpush1.bf16.msra.mxu0 0
    %2469 = vmatprep.subr.bf16.mxu0 0
    %2470 = vmatpush1.bf16.msra.mxu0 0
    %2471 = vmatprep.subr.bf16.mxu0 0
    %2472 = vmatpush1.bf16.msra.mxu0 0
    %2473 = vmatprep.subr.bf16.mxu0 0
    %2474 = vmatpush1.bf16.msra.mxu0 0
    %2475 = vmatprep.subr.bf16.mxu0 0
    %2476 = vmatpush1.bf16.msra.mxu0 0
    %2477 = vmatprep.mubr.bf16.mxu0 0
    %2478 = vmatmul.mubr.bf16.gmra.mrb[0].mxu0 %v2205
    %v2479 = vpop.f32.mrb[0].mxu0
    %v2480 = vadd.f32 %v2440, %v2479
    %v2481 = vpop.f32.mrb[0].mxu0
    %v2482 = vpop.f32.mrb[0].mxu0
    %v2483 = vpop.f32.mrb[0].mxu0
    %2484 = vdwg.mxu0
    %vm2485 = vcmask 1043456
    %v2486 = vsel %vm2485, %v2480, -inf
    %2487 = vmax.xlane.f32.xlu0 %v2486
    %v2488 = vpop.xlane.xlu0 %2487
    %v2489 = vsub.f32 %v2480, %v2488
    %v2490 = vmul.f32 %v2489, 1.442695
    %v2491 = vpow.pop %v2490
    %v2492 = vsel %vm2485, %v2491, 0.0
    %2493 = vadd.xlane.f32.xlu0 %v2492
    %v2494 = vpop.xlane.xlu0 %2493
    %v2495 = vlog2.pop %v2494
    %v2496 = vmul.f32 %v2495, 0.6931472
    %v2497 = vsub.f32 %v2489, %v2496
    %v2498 = vpack.c.bf16 %v2497, %v2497
    %2499 = vst [vmem:[#allocation11] sm:$0x3] %v2498
    // Predicated region
    $region58: #{tpu_custom_call.1} parent=1 // pred_check
      _
    $region59: #{tpu_custom_call.1} parent=1 // pred_check_branch
      %2501 = sbr.rel (0) target = $region61
    $region60: #{tpu_custom_call.1} parent=1 // pred_region
      %s2503 = ssub.s32 32, 32
      %2504 = vsyncadd [#allocation4], %s2503
      %s2506 = sshll.u32 [#allocation11], 4
      %s2507 = int_to_ptr.vmem [resolvable:$true] %s2506
      %2509 = dma.vmem_to_hbm [thread:$0]  %s2507, 32, %s9, [#allocation4]
    $region61: #{tpu_custom_call.1} parent=1 // pred_fallthru
      _
    // Predicated region
    $region62: #{tpu_custom_call.1} parent=1 // pred_check
      _
    $region63: #{tpu_custom_call.1} parent=1 // pred_check_branch
      %2511 = sbr.rel (0) target = $region65
    $region64: #{tpu_custom_call.1} parent=1 // pred_region
      %2512 = dma.done [#allocation4], 32
    $region65: #{tpu_custom_call.1} parent=1 // pred_fallthru
      _
    %2513 = vsyncpa [#allocation3], 1
    %2514 = vsyncpa [#allocation6], 1
    %2515 = vsyncpa [#allocation9], 1
    %2516 = vsyncpa [#allocation4], 1

</llo_original>
